<compile_context>
chip_gen: v7x
topology: tpu7x:2x2x1
jax: 0.10.0
libtpu: 0.0.40
codegen_flags: <defaults>
</compile_context>

<pallas_src>
import functools
import math

import jax
import jax.numpy as jnp
from jax.experimental import pallas as pl
from jax.experimental.pallas import tpu as pltpu

_NEG = -1.0e9   # large finite negative instead of -inf (avoids inf-inf NaNs)


# ----------------------------------------------------------------------------
# Kernel
# ----------------------------------------------------------------------------
def _layernorm(v, g, b, eps=1e-5):
    mu = jnp.mean(v, axis=-1, keepdims=True)
    var = jnp.mean((v - mu) ** 2, axis=-1, keepdims=True)
    return (v - mu) * jax.lax.rsqrt(var + eps) * g + b


def fused_text_encoder_kernel(
        x0_ref,                                   # [1, Bb*S, D]  f32
        ctx_ref,                                  # [1, Bb, n_ctx, D]  f32
        oneh_ref,                                 # [1, Bb, Bb*S]  f32
        ln1_g_ref, ln1_b_ref,                     # [1, 1, D]  f32
        wqkv_ref, bqkv_ref,                       # [1, D, 3D] bf16, [1, 1, 3D] f32
        wout_ref, bout_ref,                       # [1, D, D]  bf16, [1, 1, D]  f32
        ln2_g_ref, ln2_b_ref,                     # [1, 1, D]  f32
        wfc_ref, bfc_ref,                         # [1, D, F]  bf16, [1, 1, F]  f32
        wproj_ref, bproj_ref,                     # [1, F, D]  bf16, [1, 1, D]  f32
        lnf_g_ref, lnf_b_ref,                     # [1, D]  f32
        tproj_ref,                                # [D, E_pad] bf16
        out_ref,                                  # [1, Bb, E_pad] f32
        x_scr,                                    # VMEM [Bb*S, D] f32 (resident activations)
        o_scr,                                    # VMEM [Bb*S, D] f32 (per-head attn outputs)
        *, n_heads, layer_p, n_ctx, b_blk, seq):
    layer = pl.program_id(1)
    n_layers = pl.num_programs(1)
    D = x_scr.shape[-1]
    hd = D // n_heads
    bs = b_blk * seq

    # ---- layer 0: load this batch block's activations into the scratch ------
    @pl.when(layer == 0)
    def _():
        x_scr[...] = x0_ref[0]

    # ---- meta-context splice for layers 1 .. layer_p-1, in-place in VMEM ----
    @pl.when(jnp.logical_and(layer >= 1, layer < layer_p))
    def _():
        for b in range(b_blk):
            x_scr[pl.ds(b * seq + 1, n_ctx), :] = ctx_ref[0, b]

    x = x_scr[...]                                 # [bs, D] f32

    # ---------------- attention branch ----------------
    xl = _layernorm(x, ln1_g_ref[0], ln1_b_ref[0])
    # fused QKV projection (1/sqrt(hd) already folded into the q weights/bias)
    qkv = jnp.dot(xl.astype(jnp.bfloat16), wqkv_ref[0],
                  preferred_element_type=jnp.float32) + bqkv_ref[0]   # [bs, 3D] f32

    # causal mask generated in-kernel (no [BS,BS] mask input)
    row = jax.lax.broadcasted_iota(jnp.int32, (seq, seq), 0)
    col = jax.lax.broadcasted_iota(jnp.int32, (seq, seq), 1)
    causal = jnp.where(col <= row, 0.0, _NEG).astype(jnp.float32)     # [S, S]

    for h in range(n_heads):                       # static unroll over heads
        q = qkv[:, h * hd:(h + 1) * hd].reshape(b_blk, seq, hd).astype(jnp.bfloat16)
        k = qkv[:, D + h * hd:D + (h + 1) * hd].reshape(b_blk, seq, hd).astype(jnp.bfloat16)
        v = qkv[:, 2 * D + h * hd:2 * D + (h + 1) * hd].reshape(b_blk, seq, hd).astype(jnp.bfloat16)
        s = jnp.einsum("bqd,bkd->bqk", q, k,
                       preferred_element_type=jnp.float32)            # [Bb, S, S]
        s = s + causal[None]
        s = s - jnp.max(s, axis=-1, keepdims=True)
        p = jnp.exp(s)
        p = p * pl.reciprocal(jnp.sum(p, axis=-1, keepdims=True), approx=True)
        o = jnp.einsum("bqk,bkd->bqd", p.astype(jnp.bfloat16), v,
                       preferred_element_type=jnp.float32)            # [Bb, S, hd]
        o_scr[:, h * hd:(h + 1) * hd] = o.reshape(bs, hd)             # lane offsets

    # fused output projection over all heads at once
    attn = jnp.dot(o_scr[...].astype(jnp.bfloat16), wout_ref[0],
                   preferred_element_type=jnp.float32) + bout_ref[0]  # [bs, D]
    x = x + attn

    # ---------------- MLP branch (c_fc -> QuickGELU -> c_proj) ----------------
    # TODO(synk): tile wfc/wproj along F (nested pltpu.emit_pipeline) if the
    # bf16 per-layer weight set exceeds v7x's 64 MiB VMEM at D >= 768.
    xl2 = _layernorm(x, ln2_g_ref[0], ln2_b_ref[0])
    h1 = jnp.dot(xl2.astype(jnp.bfloat16), wfc_ref[0],
                 preferred_element_type=jnp.float32) + bfc_ref[0]
    h1 = h1 * jax.nn.sigmoid(1.702 * h1)           # QuickGELU (f32)
    h2 = jnp.dot(h1.astype(jnp.bfloat16), wproj_ref[0],
                 preferred_element_type=jnp.float32) + bproj_ref[0]
    x = x + h2

    x_scr[...] = x                                 # stays resident for next layer

    # ---- last layer: ln_final + EOS gather (one-hot matmul) + text_projection
    @pl.when(layer == n_layers - 1)
    def _():
        xe = jnp.dot(oneh_ref[0], x_scr[...],
                     preferred_element_type=jnp.float32)              # [Bb, D]
        xe = _layernorm(xe, lnf_g_ref[...], lnf_b_ref[...])
        out_ref[0] = jnp.dot(xe.astype(jnp.bfloat16), tproj_ref[...],
                             preferred_element_type=jnp.float32
                             ).astype(out_ref.dtype)


# ----------------------------------------------------------------------------
# Trace-time weight packing (stack layers, fused QKV, bf16 matmul weights)
# ----------------------------------------------------------------------------
def _pack_layers(layers, n_heads):
    stack = lambda key: jnp.stack([lay[key] for lay in layers], axis=0)

    wqkv = stack("wqkv")                  # [L, D, 3D] f32
    bqkv = stack("bqkv")                  # [L, 1, 3D] f32
    D = wqkv.shape[1]
    hd = D // n_heads
    scale = 1.0 / math.sqrt(hd)

    # fold the 1/sqrt(hd) softmax scale into the q third of wqkv/bqkv
    qscale = jnp.concatenate([jnp.full((D,), scale, jnp.float32),
                              jnp.ones((2 * D,), jnp.float32)])
    wqkv = wqkv * qscale[None, None, :]
    bqkv = bqkv * qscale[None, None, :]

    return dict(
        ln1_g=stack("ln1_g"), ln1_b=stack("ln1_b"),                 # [L, 1, D] f32
        wqkv=wqkv.astype(jnp.bfloat16), bqkv=bqkv,                  # bf16 / f32
        wout=stack("wout").astype(jnp.bfloat16), bout=stack("bout"),
        ln2_g=stack("ln2_g"), ln2_b=stack("ln2_b"),
        wfc=stack("wfc").astype(jnp.bfloat16), bfc=stack("bfc"),
        wproj=stack("wproj").astype(jnp.bfloat16), bproj=stack("bproj"),
    )


# ----------------------------------------------------------------------------
# Wrapper: one pallas_call for the whole TextEncoder forward
# ----------------------------------------------------------------------------
def text_encoder_forward(prompts, tokenized_prompts, ctx_t, params,
                         *, n_ctx, layer_p, n_heads, batch_blocks=1):
    B, S, D = prompts.shape
    L = len(params["layers"])
    F = params["layers"][0]["wfc"].shape[-1]
    E = params["text_proj"].shape[1]

    assert B % batch_blocks == 0, "batch must divide evenly into batch_blocks"
    NB = batch_blocks
    Bb = B // NB
    BSb = Bb * S
    E_pad = ((E + 127) // 128) * 128   # lane-dense output stores

    # glue (trace time / XLA): pos-emb add, batch-block fold, argmax -> one-hot
    x0 = (prompts + params["pos_emb"][None, :, :]).astype(jnp.float32)
    x0 = x0.reshape(NB, BSb, D)
    ctx = jnp.transpose(ctx_t, (1, 0, 2, 3)).astype(jnp.float32)     # [L, B, n_ctx, D]
    ctx = ctx.reshape(L * NB, Bb, n_ctx, D)
    eos = jnp.argmax(tokenized_prompts, axis=-1)                     # [B]
    local = (jnp.arange(B) % Bb) * S + eos                           # row inside batch block
    oneh = jax.nn.one_hot(local, BSb, dtype=jnp.float32).reshape(NB, Bb, BSb)

    tproj = params["text_proj"]
    if E_pad != E:
        tproj = jnp.pad(tproj, ((0, 0), (0, E_pad - E)))
    tproj = tproj.astype(jnp.bfloat16)

    w = _pack_layers(params["layers"], n_heads)
    ctx_last = max(min(layer_p, L) - 1, 0)

    def full_spec(arr):
        nd = arr.ndim
        return pl.BlockSpec(arr.shape, lambda b, l, _n=nd: (0,) * _n)

    def layer_spec(arr):
        nd = arr.ndim
        return pl.BlockSpec((1,) + tuple(arr.shape[1:]),
                            lambda b, l, _n=nd: (l,) + (0,) * (_n - 1))

    x0_spec = pl.BlockSpec((1, BSb, D), lambda b, l: (b, 0, 0))
    # clamp -> layers >= layer_p reuse the previous ctx block (DMA elided)
    ctx_spec = pl.BlockSpec((1, Bb, n_ctx, D),
                            lambda b, l: (jnp.minimum(l, ctx_last) * NB + b, 0, 0, 0))
    oneh_spec = pl.BlockSpec((1, Bb, BSb), lambda b, l: (b, 0, 0))
    out_spec = pl.BlockSpec((1, Bb, E_pad), lambda b, l: (b, 0, 0))

    in_specs = [
        x0_spec, ctx_spec, oneh_spec,
        layer_spec(w["ln1_g"]), layer_spec(w["ln1_b"]),
        layer_spec(w["wqkv"]), layer_spec(w["bqkv"]),
        layer_spec(w["wout"]), layer_spec(w["bout"]),
        layer_spec(w["ln2_g"]), layer_spec(w["ln2_b"]),
        layer_spec(w["wfc"]), layer_spec(w["bfc"]),
        layer_spec(w["wproj"]), layer_spec(w["bproj"]),
        full_spec(params["lnf_g"]), full_spec(params["lnf_b"]),
        full_spec(tproj),
    ]

    # explicit VMEM budget from the real per-step footprint (double-buffered)
    def nbytes(shape, dt):
        return int(math.prod(shape)) * jnp.dtype(dt).itemsize

    blk_bytes = (
        nbytes((BSb, D), jnp.float32)                 # x0 block
        + nbytes((Bb, n_ctx, D), jnp.float32)         # ctx block
        + nbytes((Bb, BSb), jnp.float32)              # one-hot
        + nbytes((D, 3 * D), jnp.bfloat16) + nbytes((1, 3 * D), jnp.float32)
        + nbytes((D, D), jnp.bfloat16) + nbytes((1, D), jnp.float32)
        + nbytes((D, F), jnp.bfloat16) + nbytes((1, F), jnp.float32)
        + nbytes((F, D), jnp.bfloat16) + nbytes((1, D), jnp.float32)
        + 6 * nbytes((1, D), jnp.float32)             # ln1/ln2/lnf scales+biases
        + nbytes((D, E_pad), jnp.bfloat16)            # text projection
        + nbytes((Bb, E_pad), jnp.float32))           # output block
    scratch_bytes = 2 * nbytes((BSb, D), jnp.float32)
    vmem_limit = int(min(64 * 2 ** 20,
                         max(8 * 2 ** 20, 2 * blk_bytes + scratch_bytes + (4 << 20))))

    kernel = functools.partial(
        fused_text_encoder_kernel,
        n_heads=n_heads, layer_p=layer_p, n_ctx=n_ctx, b_blk=Bb, seq=S)

    out = pl.pallas_call(
        kernel,
        out_shape=jax.ShapeDtypeStruct((NB, Bb, E_pad), jnp.float32),
        grid_spec=pltpu.PrefetchScalarGridSpec(
            num_scalar_prefetch=0,
            grid=(NB, L),                              # batch blocks (parallel) x layers
            in_specs=in_specs,
            out_specs=out_spec,
            scratch_shapes=[pltpu.VMEM((BSb, D), jnp.float32),
                            pltpu.VMEM((BSb, D), jnp.float32)]),
        compiler_params=pltpu.CompilerParams(
            dimension_semantics=("parallel", "arbitrary"),
            vmem_limit_bytes=vmem_limit),
    )(x0, ctx, oneh,
      w["ln1_g"], w["ln1_b"], w["wqkv"], w["bqkv"], w["wout"], w["bout"],
      w["ln2_g"], w["ln2_b"], w["wfc"], w["bfc"], w["wproj"], w["bproj"],
      params["lnf_g"], params["lnf_b"], tproj)

    return out.reshape(B, E_pad)[:, :E]


# ----------------------------------------------------------------------------
# Deterministic parameter construction (synthetic, no checkpoint)
# ----------------------------------------------------------------------------
def make_params(key, layers, seq, d_model, embed_dim):
    def normal(k, shape, scale=0.02):
        return scale * jax.random.normal(k, shape, dtype=jnp.float32)

    keys = jax.random.split(key, 3 + layers)
    layer_params = []
    for li in range(layers):
        lk = jax.random.split(keys[3 + li], 8)
        layer_params.append(dict(
            ln1_g=jnp.ones((1, d_model), jnp.float32),
            ln1_b=jnp.zeros((1, d_model), jnp.float32),
            wqkv=normal(lk[0], (d_model, 3 * d_model)),
            bqkv=normal(lk[1], (1, 3 * d_model)),
            wout=normal(lk[2], (d_model, d_model)),
            bout=normal(lk[3], (1, d_model)),
            ln2_g=jnp.ones((1, d_model), jnp.float32),
            ln2_b=jnp.zeros((1, d_model), jnp.float32),
            wfc=normal(lk[4], (d_model, 4 * d_model)),
            bfc=normal(lk[5], (1, 4 * d_model)),
            wproj=normal(lk[6], (4 * d_model, d_model)),
            bproj=normal(lk[7], (1, d_model)),
        ))

    return dict(
        pos_emb=normal(keys[0], (seq, d_model)),
        layers=layer_params,
        lnf_g=jnp.ones((1, d_model), jnp.float32),
        lnf_b=jnp.zeros((1, d_model), jnp.float32),
        text_proj=normal(keys[1], (d_model, embed_dim)),
    )


# ----------------------------------------------------------------------------
if __name__ == "__main__":
    # Small, module-consistent shapes
    batch, seq, d_model, n_heads = 2, 8, 32, 4
    layers, n_ctx, layer_p, embed_dim = 3, 4, 2, 16

    root = jax.random.PRNGKey(0)
    k_p, k_c, k_t, k_w = jax.random.split(root, 4)

    prompts = 0.02 * jax.random.normal(k_p, (batch, seq, d_model), jnp.float32)
    ctx_t = 0.02 * jax.random.normal(k_c, (batch, layers, n_ctx, d_model),
                                     jnp.float32)
    tokenized_prompts = jax.random.randint(k_t, (batch, seq), 0, 1000,
                                           dtype=jnp.int32)
    params = make_params(k_w, layers, seq, d_model, embed_dim)

    fwd = jax.jit(functools.partial(text_encoder_forward,
                                    n_ctx=n_ctx, layer_p=layer_p,
                                    n_heads=n_heads,
                                    batch_blocks=2))   # exercise dual-TC path
    out = fwd(prompts, tokenized_prompts, ctx_t, params)
    out = jax.block_until_ready(out)

    assert out.shape == (batch, embed_dim)
    assert bool(jnp.all(jnp.isfinite(out)))
    print("KERNEL_OK")
</pallas_src>

<mosaic_0001>
module attributes {stable_mosaic.version = 11 : i64} {
  func.func @fused_text_encoder_kernel(%arg0: i32, %arg1: i32, %arg2: memref<1x8x32xf32, #tpu.memory_space<vmem>>, %arg3: memref<1x1x4x32xf32, #tpu.memory_space<vmem>>, %arg4: memref<1x1x8xf32, #tpu.memory_space<vmem>>, %arg5: memref<1x1x32xf32, #tpu.memory_space<vmem>>, %arg6: memref<1x1x32xf32, #tpu.memory_space<vmem>>, %arg7: memref<1x32x96xbf16, #tpu.memory_space<vmem>>, %arg8: memref<1x1x96xf32, #tpu.memory_space<vmem>>, %arg9: memref<1x32x32xbf16, #tpu.memory_space<vmem>>, %arg10: memref<1x1x32xf32, #tpu.memory_space<vmem>>, %arg11: memref<1x1x32xf32, #tpu.memory_space<vmem>>, %arg12: memref<1x1x32xf32, #tpu.memory_space<vmem>>, %arg13: memref<1x32x128xbf16, #tpu.memory_space<vmem>>, %arg14: memref<1x1x128xf32, #tpu.memory_space<vmem>>, %arg15: memref<1x128x32xbf16, #tpu.memory_space<vmem>>, %arg16: memref<1x1x32xf32, #tpu.memory_space<vmem>>, %arg17: memref<1x32xf32, #tpu.memory_space<vmem>>, %arg18: memref<1x32xf32, #tpu.memory_space<vmem>>, %arg19: memref<32x128xbf16, #tpu.memory_space<vmem>>, %arg20: memref<1x1x128xf32, #tpu.memory_space<vmem>>, %arg21: memref<8x32xf32, #tpu.memory_space<vmem>>, %arg22: memref<8x32xf32, #tpu.memory_space<vmem>>) attributes {dimension_semantics = [#tpu.dimension_semantics<parallel>, #tpu.dimension_semantics<arbitrary>], iteration_bounds = array<i64: 2, 3>, scalar_prefetch = 0 : i64, scratch_operands = 2 : i64, tpu.core_type = #tpu.core_type<tc>, window_params = [{transform_indices = @transform_0, window_bounds = array<i64: 1, 8, 32>}, {transform_indices = @transform_1, window_bounds = array<i64: 1, 1, 4, 32>}, {transform_indices = @transform_2, window_bounds = array<i64: 1, 1, 8>}, {transform_indices = @transform_3, window_bounds = array<i64: 1, 1, 32>}, {transform_indices = @transform_4, window_bounds = array<i64: 1, 1, 32>}, {transform_indices = @transform_5, window_bounds = array<i64: 1, 32, 96>}, {transform_indices = @transform_6, window_bounds = array<i64: 1, 1, 96>}, {transform_indices = @transform_7, window_bounds = array<i64: 1, 32, 32>}, {transform_indices = @transform_8, window_bounds = array<i64: 1, 1, 32>}, {transform_indices = @transform_9, window_bounds = array<i64: 1, 1, 32>}, {transform_indices = @transform_10, window_bounds = array<i64: 1, 1, 32>}, {transform_indices = @transform_11, window_bounds = array<i64: 1, 32, 128>}, {transform_indices = @transform_12, window_bounds = array<i64: 1, 1, 128>}, {transform_indices = @transform_13, window_bounds = array<i64: 1, 128, 32>}, {transform_indices = @transform_14, window_bounds = array<i64: 1, 1, 32>}, {pipeline_mode = #tpu.pipeline_mode<synchronous>, transform_indices = @transform_15, window_bounds = array<i64: 1, 32>}, {pipeline_mode = #tpu.pipeline_mode<synchronous>, transform_indices = @transform_16, window_bounds = array<i64: 1, 32>}, {pipeline_mode = #tpu.pipeline_mode<synchronous>, transform_indices = @transform_17, window_bounds = array<i64: 32, 128>}, {transform_indices = @transform_18, window_bounds = array<i64: 1, 1, 128>}]} {
    %c0_i32 = arith.constant 0 : i32
    %0 = arith.cmpi eq, %arg1, %c0_i32 : i32
    %1 = arith.extui %0 : i1 to i32
    %c0_i32_0 = arith.constant 0 : i32
    %2 = arith.cmpi ne, %1, %c0_i32_0 : i32
    scf.if %2 {
      %c0_83 = arith.constant 0 : index
      %c0_84 = arith.constant 0 : index
      %c0_85 = arith.constant 0 : index
      %218 = vector.load %arg2[%c0_83, %c0_84, %c0_85] : memref<1x8x32xf32, #tpu.memory_space<vmem>>, vector<1x8x32xf32>
      %219 = vector.shape_cast %218 : vector<1x8x32xf32> to vector<8x32xf32>
      %c0_86 = arith.constant 0 : index
      %c0_87 = arith.constant 0 : index
      %220 = vector.load %arg21[%c0_86, %c0_87] : memref<8x32xf32, #tpu.memory_space<vmem>>, vector<8x32xf32>
      tpu.vector_store %arg21[%c0_86, %c0_87], %219 {strides = array<i32>} : memref<8x32xf32, #tpu.memory_space<vmem>>, vector<8x32xf32>,
    } else {
    }
    %c1_i32 = arith.constant 1 : i32
    %3 = arith.cmpi sge, %arg1, %c1_i32 : i32
    %c2_i32 = arith.constant 2 : i32
    %4 = arith.cmpi slt, %arg1, %c2_i32 : i32
    %5 = arith.andi %3, %4 : i1
    %6 = arith.extui %5 : i1 to i32
    %c0_i32_1 = arith.constant 0 : i32
    %7 = arith.cmpi ne, %6, %c0_i32_1 : i32
    scf.if %7 {
      %c0_83 = arith.constant 0 : index
      %c0_84 = arith.constant 0 : index
      %c0_85 = arith.constant 0 : index
      %c0_86 = arith.constant 0 : index
      %218 = vector.load %arg3[%c0_83, %c0_84, %c0_85, %c0_86] : memref<1x1x4x32xf32, #tpu.memory_space<vmem>>, vector<1x1x4x32xf32>
      %219 = vector.shape_cast %218 : vector<1x1x4x32xf32> to vector<4x32xf32>
      %c1 = arith.constant 1 : index
      %c0_87 = arith.constant 0 : index
      %220 = vector.load %arg21[%c1, %c0_87] : memref<8x32xf32, #tpu.memory_space<vmem>>, vector<4x32xf32>
      tpu.vector_store %arg21[%c1, %c0_87], %219 {strides = array<i32>} : memref<8x32xf32, #tpu.memory_space<vmem>>, vector<4x32xf32>,
    } else {
    }
    %c0 = arith.constant 0 : index
    %c0_2 = arith.constant 0 : index
    %8 = vector.load %arg21[%c0, %c0_2] : memref<8x32xf32, #tpu.memory_space<vmem>>, vector<8x32xf32>
    %c0_3 = arith.constant 0 : index
    %c0_4 = arith.constant 0 : index
    %c0_5 = arith.constant 0 : index
    %9 = vector.load %arg5[%c0_3, %c0_4, %c0_5] : memref<1x1x32xf32, #tpu.memory_space<vmem>>, vector<1x1x32xf32>
    %10 = vector.shape_cast %9 : vector<1x1x32xf32> to vector<1x32xf32>
    %c0_6 = arith.constant 0 : index
    %c0_7 = arith.constant 0 : index
    %c0_8 = arith.constant 0 : index
    %11 = vector.load %arg6[%c0_6, %c0_7, %c0_8] : memref<1x1x32xf32, #tpu.memory_space<vmem>>, vector<1x1x32xf32>
    %12 = vector.shape_cast %11 : vector<1x1x32xf32> to vector<1x32xf32>
    %cst = arith.constant dense<0.000000e+00> : vector<8xf32>
    %13 = vector.multi_reduction <add>, %8, %cst [1] : vector<8x32xf32> to vector<8xf32>
    %14 = vector.shape_cast %13 : vector<8xf32> to vector<8x1xf32>
    %cst_9 = arith.constant 3.200000e+01 : f32
    %15 = vector.broadcast %cst_9 : f32 to vector<8x1xf32>
    %16 = arith.divf %14, %15 : vector<8x1xf32>
    %17 = vector.broadcast %16 : vector<8x1xf32> to vector<8x32xf32>
    %18 = arith.subf %8, %17 : vector<8x32xf32>
    %19 = arith.mulf %18, %18 : vector<8x32xf32>
    %cst_10 = arith.constant dense<0.000000e+00> : vector<8xf32>
    %20 = vector.multi_reduction <add>, %19, %cst_10 [1] : vector<8x32xf32> to vector<8xf32>
    %21 = vector.shape_cast %20 : vector<8xf32> to vector<8x1xf32>
    %cst_11 = arith.constant 3.200000e+01 : f32
    %22 = vector.broadcast %cst_11 : f32 to vector<8x1xf32>
    %23 = arith.divf %21, %22 : vector<8x1xf32>
    %24 = vector.broadcast %16 : vector<8x1xf32> to vector<8x32xf32>
    %25 = arith.subf %8, %24 : vector<8x32xf32>
    %cst_12 = arith.constant 9.99999974E-6 : f32
    %26 = vector.broadcast %cst_12 : f32 to vector<8x1xf32>
    %27 = arith.addf %23, %26 : vector<8x1xf32>
    %28 = math.rsqrt %27 : vector<8x1xf32>
    %29 = vector.broadcast %28 : vector<8x1xf32> to vector<8x32xf32>
    %30 = arith.mulf %25, %29 : vector<8x32xf32>
    %31 = vector.broadcast %10 : vector<1x32xf32> to vector<8x32xf32>
    %32 = arith.mulf %30, %31 : vector<8x32xf32>
    %33 = vector.broadcast %12 : vector<1x32xf32> to vector<8x32xf32>
    %34 = arith.addf %32, %33 : vector<8x32xf32>
    %35 = arith.truncf %34 : vector<8x32xf32> to vector<8x32xbf16>
    %c0_13 = arith.constant 0 : index
    %c0_14 = arith.constant 0 : index
    %c0_15 = arith.constant 0 : index
    %36 = vector.load %arg7[%c0_13, %c0_14, %c0_15] : memref<1x32x96xbf16, #tpu.memory_space<vmem>>, vector<1x32x96xbf16>
    %37 = vector.shape_cast %36 : vector<1x32x96xbf16> to vector<32x96xbf16>
    %cst_16 = arith.constant dense<0.000000e+00> : vector<8x96xf32>
    %38 = tpu.matmul %35, %37, %cst_16 {dimension_numbers = #tpu.dot_dimension_numbers<[1], [0], [0], [1], [0, 0, 1, 1], [], []>} : vector<8x32xbf16>, vector<32x96xbf16>, vector<8x96xf32> -> vector<8x96xf32>
    %c0_17 = arith.constant 0 : index
    %c0_18 = arith.constant 0 : index
    %c0_19 = arith.constant 0 : index
    %39 = vector.load %arg8[%c0_17, %c0_18, %c0_19] : memref<1x1x96xf32, #tpu.memory_space<vmem>>, vector<1x1x96xf32>
    %40 = vector.shape_cast %39 : vector<1x1x96xf32> to vector<1x96xf32>
    %41 = vector.broadcast %40 : vector<1x96xf32> to vector<8x96xf32>
    %42 = arith.addf %38, %41 : vector<8x96xf32>
    %43 = tpu.iota {dimensions = array<i32: 0>} : vector<8x8xi32>
    %44 = tpu.iota {dimensions = array<i32: 1>} : vector<8x8xi32>
    %45 = arith.cmpi sle, %44, %43 : vector<8x8xi32>
    %cst_20 = arith.constant 0.000000e+00 : f32
    %cst_21 = arith.constant -1.000000e+09 : f32
    %46 = vector.broadcast %cst_20 : f32 to vector<8x8xf32>
    %47 = vector.broadcast %cst_21 : f32 to vector<8x8xf32>
    %48 = arith.select %45, %46, %47 : vector<8x8xi1>, vector<8x8xf32>
    %49 = vector.extract_strided_slice %42 {offsets = [0, 0], sizes = [8, 8], strides = [1, 1]} : vector<8x96xf32> to vector<8x8xf32>
    %50 = vector.shape_cast %49 : vector<8x8xf32> to vector<1x8x8xf32>
    %51 = arith.truncf %50 : vector<1x8x8xf32> to vector<1x8x8xbf16>
    %52 = vector.extract_strided_slice %42 {offsets = [0, 32], sizes = [8, 8], strides = [1, 1]} : vector<8x96xf32> to vector<8x8xf32>
    %53 = vector.shape_cast %52 : vector<8x8xf32> to vector<1x8x8xf32>
    %54 = arith.truncf %53 : vector<1x8x8xf32> to vector<1x8x8xbf16>
    %55 = vector.extract_strided_slice %42 {offsets = [0, 64], sizes = [8, 8], strides = [1, 1]} : vector<8x96xf32> to vector<8x8xf32>
    %56 = vector.shape_cast %55 : vector<8x8xf32> to vector<1x8x8xf32>
    %57 = arith.truncf %56 : vector<1x8x8xf32> to vector<1x8x8xbf16>
    "tpu.trace_start"() <{level = 10 : i32, message = "bqd,bkd->bqk"}> : () -> ()
    %cst_22 = arith.constant dense<0.000000e+00> : vector<1x8x8xf32>
    %58 = tpu.matmul %51, %54, %cst_22 {dimension_numbers = #tpu.dot_dimension_numbers<[2], [2], [1], [1], [0, 0, 0, 1, 1, 1], [0], [0]>} : vector<1x8x8xbf16>, vector<1x8x8xbf16>, vector<1x8x8xf32> -> vector<1x8x8xf32>
    "tpu.trace_stop"() : () -> ()
    %59 = vector.shape_cast %48 : vector<8x8xf32> to vector<1x8x8xf32>
    %60 = arith.addf %58, %59 : vector<1x8x8xf32>
    %cst_23 = arith.constant dense<0xFF800000> : vector<1x8xf32>
    %61 = vector.multi_reduction <maximumf>, %60, %cst_23 [2] : vector<1x8x8xf32> to vector<1x8xf32>
    %62 = vector.shape_cast %61 : vector<1x8xf32> to vector<1x8x1xf32>
    %63 = vector.broadcast %62 : vector<1x8x1xf32> to vector<1x8x8xf32>
    %64 = arith.subf %60, %63 : vector<1x8x8xf32>
    %65 = math.exp %64 : vector<1x8x8xf32>
    %cst_24 = arith.constant dense<0.000000e+00> : vector<1x8xf32>
    %66 = vector.multi_reduction <add>, %65, %cst_24 [2] : vector<1x8x8xf32> to vector<1x8xf32>
    %67 = vector.shape_cast %66 : vector<1x8xf32> to vector<1x8x1xf32>
    %68 = tpu.reciprocal %67 {approx = true} : vector<1x8x1xf32> -> vector<1x8x1xf32>
    %69 = vector.broadcast %68 : vector<1x8x1xf32> to vector<1x8x8xf32>
    %70 = arith.mulf %65, %69 : vector<1x8x8xf32>
    %71 = arith.truncf %70 : vector<1x8x8xf32> to vector<1x8x8xbf16>
    "tpu.trace_start"() <{level = 10 : i32, message = "bqk,bkd->bqd"}> : () -> ()
    %cst_25 = arith.constant dense<0.000000e+00> : vector<1x8x8xf32>
    %72 = tpu.matmul %71, %57, %cst_25 {dimension_numbers = #tpu.dot_dimension_numbers<[2], [1], [1], [2], [0, 0, 0, 1, 1, 2], [0], [0]>} : vector<1x8x8xbf16>, vector<1x8x8xbf16>, vector<1x8x8xf32> -> vector<1x8x8xf32>
    "tpu.trace_stop"() : () -> ()
    %73 = vector.shape_cast %72 : vector<1x8x8xf32> to vector<8x8xf32>
    %c0_26 = arith.constant 0 : index
    %c0_27 = arith.constant 0 : index
    %74 = vector.load %arg22[%c0_26, %c0_27] : memref<8x32xf32, #tpu.memory_space<vmem>>, vector<8x8xf32>
    tpu.vector_store %arg22[%c0_26, %c0_27], %73 {strides = array<i32>} : memref<8x32xf32, #tpu.memory_space<vmem>>, vector<8x8xf32>,
    %75 = vector.extract_strided_slice %42 {offsets = [0, 8], sizes = [8, 8], strides = [1, 1]} : vector<8x96xf32> to vector<8x8xf32>
    %76 = vector.shape_cast %75 : vector<8x8xf32> to vector<1x8x8xf32>
    %77 = arith.truncf %76 : vector<1x8x8xf32> to vector<1x8x8xbf16>
    %78 = vector.extract_strided_slice %42 {offsets = [0, 40], sizes = [8, 8], strides = [1, 1]} : vector<8x96xf32> to vector<8x8xf32>
    %79 = vector.shape_cast %78 : vector<8x8xf32> to vector<1x8x8xf32>
    %80 = arith.truncf %79 : vector<1x8x8xf32> to vector<1x8x8xbf16>
    %81 = vector.extract_strided_slice %42 {offsets = [0, 72], sizes = [8, 8], strides = [1, 1]} : vector<8x96xf32> to vector<8x8xf32>
    %82 = vector.shape_cast %81 : vector<8x8xf32> to vector<1x8x8xf32>
    %83 = arith.truncf %82 : vector<1x8x8xf32> to vector<1x8x8xbf16>
    "tpu.trace_start"() <{level = 10 : i32, message = "bqd,bkd->bqk"}> : () -> ()
    %cst_28 = arith.constant dense<0.000000e+00> : vector<1x8x8xf32>
    %84 = tpu.matmul %77, %80, %cst_28 {dimension_numbers = #tpu.dot_dimension_numbers<[2], [2], [1], [1], [0, 0, 0, 1, 1, 1], [0], [0]>} : vector<1x8x8xbf16>, vector<1x8x8xbf16>, vector<1x8x8xf32> -> vector<1x8x8xf32>
    "tpu.trace_stop"() : () -> ()
    %85 = vector.shape_cast %48 : vector<8x8xf32> to vector<1x8x8xf32>
    %86 = arith.addf %84, %85 : vector<1x8x8xf32>
    %cst_29 = arith.constant dense<0xFF800000> : vector<1x8xf32>
    %87 = vector.multi_reduction <maximumf>, %86, %cst_29 [2] : vector<1x8x8xf32> to vector<1x8xf32>
    %88 = vector.shape_cast %87 : vector<1x8xf32> to vector<1x8x1xf32>
    %89 = vector.broadcast %88 : vector<1x8x1xf32> to vector<1x8x8xf32>
    %90 = arith.subf %86, %89 : vector<1x8x8xf32>
    %91 = math.exp %90 : vector<1x8x8xf32>
    %cst_30 = arith.constant dense<0.000000e+00> : vector<1x8xf32>
    %92 = vector.multi_reduction <add>, %91, %cst_30 [2] : vector<1x8x8xf32> to vector<1x8xf32>
    %93 = vector.shape_cast %92 : vector<1x8xf32> to vector<1x8x1xf32>
    %94 = tpu.reciprocal %93 {approx = true} : vector<1x8x1xf32> -> vector<1x8x1xf32>
    %95 = vector.broadcast %94 : vector<1x8x1xf32> to vector<1x8x8xf32>
    %96 = arith.mulf %91, %95 : vector<1x8x8xf32>
    %97 = arith.truncf %96 : vector<1x8x8xf32> to vector<1x8x8xbf16>
    "tpu.trace_start"() <{level = 10 : i32, message = "bqk,bkd->bqd"}> : () -> ()
    %cst_31 = arith.constant dense<0.000000e+00> : vector<1x8x8xf32>
    %98 = tpu.matmul %97, %83, %cst_31 {dimension_numbers = #tpu.dot_dimension_numbers<[2], [1], [1], [2], [0, 0, 0, 1, 1, 2], [0], [0]>} : vector<1x8x8xbf16>, vector<1x8x8xbf16>, vector<1x8x8xf32> -> vector<1x8x8xf32>
    "tpu.trace_stop"() : () -> ()
    %99 = vector.shape_cast %98 : vector<1x8x8xf32> to vector<8x8xf32>
    %c0_32 = arith.constant 0 : index
    %c8 = arith.constant 8 : index
    %100 = vector.load %arg22[%c0_32, %c8] : memref<8x32xf32, #tpu.memory_space<vmem>>, vector<8x8xf32>
    tpu.vector_store %arg22[%c0_32, %c8], %99 {strides = array<i32>} : memref<8x32xf32, #tpu.memory_space<vmem>>, vector<8x8xf32>,
    %101 = vector.extract_strided_slice %42 {offsets = [0, 16], sizes = [8, 8], strides = [1, 1]} : vector<8x96xf32> to vector<8x8xf32>
    %102 = vector.shape_cast %101 : vector<8x8xf32> to vector<1x8x8xf32>
    %103 = arith.truncf %102 : vector<1x8x8xf32> to vector<1x8x8xbf16>
    %104 = vector.extract_strided_slice %42 {offsets = [0, 48], sizes = [8, 8], strides = [1, 1]} : vector<8x96xf32> to vector<8x8xf32>
    %105 = vector.shape_cast %104 : vector<8x8xf32> to vector<1x8x8xf32>
    %106 = arith.truncf %105 : vector<1x8x8xf32> to vector<1x8x8xbf16>
    %107 = vector.extract_strided_slice %42 {offsets = [0, 80], sizes = [8, 8], strides = [1, 1]} : vector<8x96xf32> to vector<8x8xf32>
    %108 = vector.shape_cast %107 : vector<8x8xf32> to vector<1x8x8xf32>
    %109 = arith.truncf %108 : vector<1x8x8xf32> to vector<1x8x8xbf16>
    "tpu.trace_start"() <{level = 10 : i32, message = "bqd,bkd->bqk"}> : () -> ()
    %cst_33 = arith.constant dense<0.000000e+00> : vector<1x8x8xf32>
    %110 = tpu.matmul %103, %106, %cst_33 {dimension_numbers = #tpu.dot_dimension_numbers<[2], [2], [1], [1], [0, 0, 0, 1, 1, 1], [0], [0]>} : vector<1x8x8xbf16>, vector<1x8x8xbf16>, vector<1x8x8xf32> -> vector<1x8x8xf32>
    "tpu.trace_stop"() : () -> ()
    %111 = vector.shape_cast %48 : vector<8x8xf32> to vector<1x8x8xf32>
    %112 = arith.addf %110, %111 : vector<1x8x8xf32>
    %cst_34 = arith.constant dense<0xFF800000> : vector<1x8xf32>
    %113 = vector.multi_reduction <maximumf>, %112, %cst_34 [2] : vector<1x8x8xf32> to vector<1x8xf32>
    %114 = vector.shape_cast %113 : vector<1x8xf32> to vector<1x8x1xf32>
    %115 = vector.broadcast %114 : vector<1x8x1xf32> to vector<1x8x8xf32>
    %116 = arith.subf %112, %115 : vector<1x8x8xf32>
    %117 = math.exp %116 : vector<1x8x8xf32>
    %cst_35 = arith.constant dense<0.000000e+00> : vector<1x8xf32>
    %118 = vector.multi_reduction <add>, %117, %cst_35 [2] : vector<1x8x8xf32> to vector<1x8xf32>
    %119 = vector.shape_cast %118 : vector<1x8xf32> to vector<1x8x1xf32>
    %120 = tpu.reciprocal %119 {approx = true} : vector<1x8x1xf32> -> vector<1x8x1xf32>
    %121 = vector.broadcast %120 : vector<1x8x1xf32> to vector<1x8x8xf32>
    %122 = arith.mulf %117, %121 : vector<1x8x8xf32>
    %123 = arith.truncf %122 : vector<1x8x8xf32> to vector<1x8x8xbf16>
    "tpu.trace_start"() <{level = 10 : i32, message = "bqk,bkd->bqd"}> : () -> ()
    %cst_36 = arith.constant dense<0.000000e+00> : vector<1x8x8xf32>
    %124 = tpu.matmul %123, %109, %cst_36 {dimension_numbers = #tpu.dot_dimension_numbers<[2], [1], [1], [2], [0, 0, 0, 1, 1, 2], [0], [0]>} : vector<1x8x8xbf16>, vector<1x8x8xbf16>, vector<1x8x8xf32> -> vector<1x8x8xf32>
    "tpu.trace_stop"() : () -> ()
    %125 = vector.shape_cast %124 : vector<1x8x8xf32> to vector<8x8xf32>
    %c0_37 = arith.constant 0 : index
    %c16 = arith.constant 16 : index
    %126 = vector.load %arg22[%c0_37, %c16] : memref<8x32xf32, #tpu.memory_space<vmem>>, vector<8x8xf32>
    tpu.vector_store %arg22[%c0_37, %c16], %125 {strides = array<i32>} : memref<8x32xf32, #tpu.memory_space<vmem>>, vector<8x8xf32>,
    %127 = vector.extract_strided_slice %42 {offsets = [0, 24], sizes = [8, 8], strides = [1, 1]} : vector<8x96xf32> to vector<8x8xf32>
    %128 = vector.shape_cast %127 : vector<8x8xf32> to vector<1x8x8xf32>
    %129 = arith.truncf %128 : vector<1x8x8xf32> to vector<1x8x8xbf16>
    %130 = vector.extract_strided_slice %42 {offsets = [0, 56], sizes = [8, 8], strides = [1, 1]} : vector<8x96xf32> to vector<8x8xf32>
    %131 = vector.shape_cast %130 : vector<8x8xf32> to vector<1x8x8xf32>
    %132 = arith.truncf %131 : vector<1x8x8xf32> to vector<1x8x8xbf16>
    %133 = vector.extract_strided_slice %42 {offsets = [0, 88], sizes = [8, 8], strides = [1, 1]} : vector<8x96xf32> to vector<8x8xf32>
    %134 = vector.shape_cast %133 : vector<8x8xf32> to vector<1x8x8xf32>
    %135 = arith.truncf %134 : vector<1x8x8xf32> to vector<1x8x8xbf16>
    "tpu.trace_start"() <{level = 10 : i32, message = "bqd,bkd->bqk"}> : () -> ()
    %cst_38 = arith.constant dense<0.000000e+00> : vector<1x8x8xf32>
    %136 = tpu.matmul %129, %132, %cst_38 {dimension_numbers = #tpu.dot_dimension_numbers<[2], [2], [1], [1], [0, 0, 0, 1, 1, 1], [0], [0]>} : vector<1x8x8xbf16>, vector<1x8x8xbf16>, vector<1x8x8xf32> -> vector<1x8x8xf32>
    "tpu.trace_stop"() : () -> ()
    %137 = vector.shape_cast %48 : vector<8x8xf32> to vector<1x8x8xf32>
    %138 = arith.addf %136, %137 : vector<1x8x8xf32>
    %cst_39 = arith.constant dense<0xFF800000> : vector<1x8xf32>
    %139 = vector.multi_reduction <maximumf>, %138, %cst_39 [2] : vector<1x8x8xf32> to vector<1x8xf32>
    %140 = vector.shape_cast %139 : vector<1x8xf32> to vector<1x8x1xf32>
    %141 = vector.broadcast %140 : vector<1x8x1xf32> to vector<1x8x8xf32>
    %142 = arith.subf %138, %141 : vector<1x8x8xf32>
    %143 = math.exp %142 : vector<1x8x8xf32>
    %cst_40 = arith.constant dense<0.000000e+00> : vector<1x8xf32>
    %144 = vector.multi_reduction <add>, %143, %cst_40 [2] : vector<1x8x8xf32> to vector<1x8xf32>
    %145 = vector.shape_cast %144 : vector<1x8xf32> to vector<1x8x1xf32>
    %146 = tpu.reciprocal %145 {approx = true} : vector<1x8x1xf32> -> vector<1x8x1xf32>
    %147 = vector.broadcast %146 : vector<1x8x1xf32> to vector<1x8x8xf32>
    %148 = arith.mulf %143, %147 : vector<1x8x8xf32>
    %149 = arith.truncf %148 : vector<1x8x8xf32> to vector<1x8x8xbf16>
    "tpu.trace_start"() <{level = 10 : i32, message = "bqk,bkd->bqd"}> : () -> ()
    %cst_41 = arith.constant dense<0.000000e+00> : vector<1x8x8xf32>
    %150 = tpu.matmul %149, %135, %cst_41 {dimension_numbers = #tpu.dot_dimension_numbers<[2], [1], [1], [2], [0, 0, 0, 1, 1, 2], [0], [0]>} : vector<1x8x8xbf16>, vector<1x8x8xbf16>, vector<1x8x8xf32> -> vector<1x8x8xf32>
    "tpu.trace_stop"() : () -> ()
    %151 = vector.shape_cast %150 : vector<1x8x8xf32> to vector<8x8xf32>
    %c0_42 = arith.constant 0 : index
    %c24 = arith.constant 24 : index
    %152 = vector.load %arg22[%c0_42, %c24] : memref<8x32xf32, #tpu.memory_space<vmem>>, vector<8x8xf32>
    tpu.vector_store %arg22[%c0_42, %c24], %151 {strides = array<i32>} : memref<8x32xf32, #tpu.memory_space<vmem>>, vector<8x8xf32>,
    %c0_43 = arith.constant 0 : index
    %c0_44 = arith.constant 0 : index
    %153 = vector.load %arg22[%c0_43, %c0_44] : memref<8x32xf32, #tpu.memory_space<vmem>>, vector<8x32xf32>
    %154 = arith.truncf %153 : vector<8x32xf32> to vector<8x32xbf16>
    %c0_45 = arith.constant 0 : index
    %c0_46 = arith.constant 0 : index
    %c0_47 = arith.constant 0 : index
    %155 = vector.load %arg9[%c0_45, %c0_46, %c0_47] : memref<1x32x32xbf16, #tpu.memory_space<vmem>>, vector<1x32x32xbf16>
    %156 = vector.shape_cast %155 : vector<1x32x32xbf16> to vector<32x32xbf16>
    %cst_48 = arith.constant dense<0.000000e+00> : vector<8x32xf32>
    %157 = tpu.matmul %154, %156, %cst_48 {dimension_numbers = #tpu.dot_dimension_numbers<[1], [0], [0], [1], [0, 0, 1, 1], [], []>} : vector<8x32xbf16>, vector<32x32xbf16>, vector<8x32xf32> -> vector<8x32xf32>
    %c0_49 = arith.constant 0 : index
    %c0_50 = arith.constant 0 : index
    %c0_51 = arith.constant 0 : index
    %158 = vector.load %arg10[%c0_49, %c0_50, %c0_51] : memref<1x1x32xf32, #tpu.memory_space<vmem>>, vector<1x1x32xf32>
    %159 = vector.shape_cast %158 : vector<1x1x32xf32> to vector<1x32xf32>
    %160 = vector.broadcast %159 : vector<1x32xf32> to vector<8x32xf32>
    %161 = arith.addf %157, %160 : vector<8x32xf32>
    %162 = arith.addf %8, %161 : vector<8x32xf32>
    %c0_52 = arith.constant 0 : index
    %c0_53 = arith.constant 0 : index
    %c0_54 = arith.constant 0 : index
    %163 = vector.load %arg11[%c0_52, %c0_53, %c0_54] : memref<1x1x32xf32, #tpu.memory_space<vmem>>, vector<1x1x32xf32>
    %164 = vector.shape_cast %163 : vector<1x1x32xf32> to vector<1x32xf32>
    %c0_55 = arith.constant 0 : index
    %c0_56 = arith.constant 0 : index
    %c0_57 = arith.constant 0 : index
    %165 = vector.load %arg12[%c0_55, %c0_56, %c0_57] : memref<1x1x32xf32, #tpu.memory_space<vmem>>, vector<1x1x32xf32>
    %166 = vector.shape_cast %165 : vector<1x1x32xf32> to vector<1x32xf32>
    %cst_58 = arith.constant dense<0.000000e+00> : vector<8xf32>
    %167 = vector.multi_reduction <add>, %162, %cst_58 [1] : vector<8x32xf32> to vector<8xf32>
    %168 = vector.shape_cast %167 : vector<8xf32> to vector<8x1xf32>
    %cst_59 = arith.constant 3.200000e+01 : f32
    %169 = vector.broadcast %cst_59 : f32 to vector<8x1xf32>
    %170 = arith.divf %168, %169 : vector<8x1xf32>
    %171 = vector.broadcast %170 : vector<8x1xf32> to vector<8x32xf32>
    %172 = arith.subf %162, %171 : vector<8x32xf32>
    %173 = arith.mulf %172, %172 : vector<8x32xf32>
    %cst_60 = arith.constant dense<0.000000e+00> : vector<8xf32>
    %174 = vector.multi_reduction <add>, %173, %cst_60 [1] : vector<8x32xf32> to vector<8xf32>
    %175 = vector.shape_cast %174 : vector<8xf32> to vector<8x1xf32>
    %cst_61 = arith.constant 3.200000e+01 : f32
    %176 = vector.broadcast %cst_61 : f32 to vector<8x1xf32>
    %177 = arith.divf %175, %176 : vector<8x1xf32>
    %178 = vector.broadcast %170 : vector<8x1xf32> to vector<8x32xf32>
    %179 = arith.subf %162, %178 : vector<8x32xf32>
    %cst_62 = arith.constant 9.99999974E-6 : f32
    %180 = vector.broadcast %cst_62 : f32 to vector<8x1xf32>
    %181 = arith.addf %177, %180 : vector<8x1xf32>
    %182 = math.rsqrt %181 : vector<8x1xf32>
    %183 = vector.broadcast %182 : vector<8x1xf32> to vector<8x32xf32>
    %184 = arith.mulf %179, %183 : vector<8x32xf32>
    %185 = vector.broadcast %164 : vector<1x32xf32> to vector<8x32xf32>
    %186 = arith.mulf %184, %185 : vector<8x32xf32>
    %187 = vector.broadcast %166 : vector<1x32xf32> to vector<8x32xf32>
    %188 = arith.addf %186, %187 : vector<8x32xf32>
    %189 = arith.truncf %188 : vector<8x32xf32> to vector<8x32xbf16>
    %c0_63 = arith.constant 0 : index
    %c0_64 = arith.constant 0 : index
    %c0_65 = arith.constant 0 : index
    %190 = vector.load %arg13[%c0_63, %c0_64, %c0_65] : memref<1x32x128xbf16, #tpu.memory_space<vmem>>, vector<1x32x128xbf16>
    %191 = vector.shape_cast %190 : vector<1x32x128xbf16> to vector<32x128xbf16>
    %cst_66 = arith.constant dense<0.000000e+00> : vector<8x128xf32>
    %192 = tpu.matmul %189, %191, %cst_66 {dimension_numbers = #tpu.dot_dimension_numbers<[1], [0], [0], [1], [0, 0, 1, 1], [], []>} : vector<8x32xbf16>, vector<32x128xbf16>, vector<8x128xf32> -> vector<8x128xf32>
    %c0_67 = arith.constant 0 : index
    %c0_68 = arith.constant 0 : index
    %c0_69 = arith.constant 0 : index
    %193 = vector.load %arg14[%c0_67, %c0_68, %c0_69] : memref<1x1x128xf32, #tpu.memory_space<vmem>>, vector<1x1x128xf32>
    %194 = vector.shape_cast %193 : vector<1x1x128xf32> to vector<1x128xf32>
    %195 = vector.broadcast %194 : vector<1x128xf32> to vector<8x128xf32>
    %196 = arith.addf %192, %195 : vector<8x128xf32>
    %cst_70 = arith.constant 1.702000e+00 : f32
    %197 = vector.broadcast %cst_70 : f32 to vector<8x128xf32>
    %198 = arith.mulf %197, %196 : vector<8x128xf32>
    %199 = arith.negf %198 : vector<8x128xf32>
    %200 = math.exp %199 : vector<8x128xf32>
    %cst_71 = arith.constant 1.000000e+00 : f32
    %201 = vector.broadcast %cst_71 : f32 to vector<8x128xf32>
    %202 = arith.addf %201, %200 : vector<8x128xf32>
    %203 = arith.divf %201, %202 : vector<8x128xf32>
    %204 = arith.mulf %196, %203 : vector<8x128xf32>
    %205 = arith.truncf %204 : vector<8x128xf32> to vector<8x128xbf16>
    %c0_72 = arith.constant 0 : index
    %c0_73 = arith.constant 0 : index
    %c0_74 = arith.constant 0 : index
    %206 = vector.load %arg15[%c0_72, %c0_73, %c0_74] : memref<1x128x32xbf16, #tpu.memory_space<vmem>>, vector<1x128x32xbf16>
    %207 = vector.shape_cast %206 : vector<1x128x32xbf16> to vector<128x32xbf16>
    %cst_75 = arith.constant dense<0.000000e+00> : vector<8x32xf32>
    %208 = tpu.matmul %205, %207, %cst_75 {dimension_numbers = #tpu.dot_dimension_numbers<[1], [0], [0], [1], [0, 0, 1, 1], [], []>} : vector<8x128xbf16>, vector<128x32xbf16>, vector<8x32xf32> -> vector<8x32xf32>
    %c0_76 = arith.constant 0 : index
    %c0_77 = arith.constant 0 : index
    %c0_78 = arith.constant 0 : index
    %209 = vector.load %arg16[%c0_76, %c0_77, %c0_78] : memref<1x1x32xf32, #tpu.memory_space<vmem>>, vector<1x1x32xf32>
    %210 = vector.shape_cast %209 : vector<1x1x32xf32> to vector<1x32xf32>
    %211 = vector.broadcast %210 : vector<1x32xf32> to vector<8x32xf32>
    %212 = arith.addf %208, %211 : vector<8x32xf32>
    %213 = arith.addf %162, %212 : vector<8x32xf32>
    %c0_79 = arith.constant 0 : index
    %c0_80 = arith.constant 0 : index
    %214 = vector.load %arg21[%c0_79, %c0_80] : memref<8x32xf32, #tpu.memory_space<vmem>>, vector<8x32xf32>
    tpu.vector_store %arg21[%c0_79, %c0_80], %213 {strides = array<i32>} : memref<8x32xf32, #tpu.memory_space<vmem>>, vector<8x32xf32>,
    %c2_i32_81 = arith.constant 2 : i32
    %215 = arith.cmpi eq, %arg1, %c2_i32_81 : i32
    %216 = arith.extui %215 : i1 to i32
    %c0_i32_82 = arith.constant 0 : i32
    %217 = arith.cmpi ne, %216, %c0_i32_82 : i32
    scf.if %217 {
      %c0_83 = arith.constant 0 : index
      %c0_84 = arith.constant 0 : index
      %c0_85 = arith.constant 0 : index
      %218 = vector.load %arg4[%c0_83, %c0_84, %c0_85] : memref<1x1x8xf32, #tpu.memory_space<vmem>>, vector<1x1x8xf32>
      %219 = vector.shape_cast %218 : vector<1x1x8xf32> to vector<1x8xf32>
      %c0_86 = arith.constant 0 : index
      %c0_87 = arith.constant 0 : index
      %220 = vector.load %arg21[%c0_86, %c0_87] : memref<8x32xf32, #tpu.memory_space<vmem>>, vector<8x32xf32>
      %cst_88 = arith.constant dense<0.000000e+00> : vector<1x32xf32>
      %221 = tpu.matmul %219, %220, %cst_88 {dimension_numbers = #tpu.dot_dimension_numbers<[1], [0], [0], [1], [0, 0, 1, 1], [], []>} : vector<1x8xf32>, vector<8x32xf32>, vector<1x32xf32> -> vector<1x32xf32>
      %c0_89 = arith.constant 0 : index
      %c0_90 = arith.constant 0 : index
      %222 = vector.load %arg17[%c0_89, %c0_90] : memref<1x32xf32, #tpu.memory_space<vmem>>, vector<1x32xf32>
      %c0_91 = arith.constant 0 : index
      %c0_92 = arith.constant 0 : index
      %223 = vector.load %arg18[%c0_91, %c0_92] : memref<1x32xf32, #tpu.memory_space<vmem>>, vector<1x32xf32>
      %cst_93 = arith.constant dense<0.000000e+00> : vector<1xf32>
      %224 = vector.multi_reduction <add>, %221, %cst_93 [1] : vector<1x32xf32> to vector<1xf32>
      %225 = vector.shape_cast %224 : vector<1xf32> to vector<1x1xf32>
      %cst_94 = arith.constant 3.200000e+01 : f32
      %226 = vector.broadcast %cst_94 : f32 to vector<1x1xf32>
      %227 = arith.divf %225, %226 : vector<1x1xf32>
      %228 = vector.broadcast %227 : vector<1x1xf32> to vector<1x32xf32>
      %229 = arith.subf %221, %228 : vector<1x32xf32>
      %230 = arith.mulf %229, %229 : vector<1x32xf32>
      %cst_95 = arith.constant dense<0.000000e+00> : vector<1xf32>
      %231 = vector.multi_reduction <add>, %230, %cst_95 [1] : vector<1x32xf32> to vector<1xf32>
      %232 = vector.shape_cast %231 : vector<1xf32> to vector<1x1xf32>
      %cst_96 = arith.constant 3.200000e+01 : f32
      %233 = vector.broadcast %cst_96 : f32 to vector<1x1xf32>
      %234 = arith.divf %232, %233 : vector<1x1xf32>
      %235 = vector.broadcast %227 : vector<1x1xf32> to vector<1x32xf32>
      %236 = arith.subf %221, %235 : vector<1x32xf32>
      %cst_97 = arith.constant 9.99999974E-6 : f32
      %237 = vector.broadcast %cst_97 : f32 to vector<1x1xf32>
      %238 = arith.addf %234, %237 : vector<1x1xf32>
      %239 = math.rsqrt %238 : vector<1x1xf32>
      %240 = vector.broadcast %239 : vector<1x1xf32> to vector<1x32xf32>
      %241 = arith.mulf %236, %240 : vector<1x32xf32>
      %242 = arith.mulf %241, %222 : vector<1x32xf32>
      %243 = arith.addf %242, %223 : vector<1x32xf32>
      %244 = arith.truncf %243 : vector<1x32xf32> to vector<1x32xbf16>
      %c0_98 = arith.constant 0 : index
      %c0_99 = arith.constant 0 : index
      %245 = vector.load %arg19[%c0_98, %c0_99] : memref<32x128xbf16, #tpu.memory_space<vmem>>, vector<32x128xbf16>
      %cst_100 = arith.constant dense<0.000000e+00> : vector<1x128xf32>
      %246 = tpu.matmul %244, %245, %cst_100 {dimension_numbers = #tpu.dot_dimension_numbers<[1], [0], [0], [1], [0, 0, 1, 1], [], []>} : vector<1x32xbf16>, vector<32x128xbf16>, vector<1x128xf32> -> vector<1x128xf32>
      %c0_101 = arith.constant 0 : index
      %c0_102 = arith.constant 0 : index
      %c0_103 = arith.constant 0 : index
      %247 = vector.load %arg20[%c0_101, %c0_102, %c0_103] : memref<1x1x128xf32, #tpu.memory_space<vmem>>, vector<1x1x128xf32>
      %248 = vector.shape_cast %247 : vector<1x1x128xf32> to vector<1x128xf32>
      %249 = vector.shape_cast %246 : vector<1x128xf32> to vector<1x1x128xf32>
      tpu.vector_store %arg20[%c0_101, %c0_102, %c0_103], %249 {strides = array<i32>} : memref<1x1x128xf32, #tpu.memory_space<vmem>>, vector<1x1x128xf32>,
    } else {
    }
    return
  }
  func.func @transform_0(%arg0: i32, %arg1: i32) -> (i32, i32, i32) {
    %c0_i32 = arith.constant 0 : i32
    %c0_i32_0 = arith.constant 0 : i32
    %c0_i32_1 = arith.constant 0 : i32
    return %arg0, %c0_i32, %c0_i32_0 : i32, i32, i32
  }
  func.func @transform_1(%arg0: i32, %arg1: i32) -> (i32, i32, i32, i32) {
    %c1_i32 = arith.constant 1 : i32
    %0 = arith.minsi %arg1, %c1_i32 : i32
    %c2_i32 = arith.constant 2 : i32
    %1 = arith.muli %0, %c2_i32 : i32
    %2 = arith.addi %1, %arg0 : i32
    %c0_i32 = arith.constant 0 : i32
    %c0_i32_0 = arith.constant 0 : i32
    %c0_i32_1 = arith.constant 0 : i32
    %c0_i32_2 = arith.constant 0 : i32
    return %2, %c0_i32, %c0_i32_0, %c0_i32_1 : i32, i32, i32, i32
  }
  func.func @transform_2(%arg0: i32, %arg1: i32) -> (i32, i32, i32) {
    %c0_i32 = arith.constant 0 : i32
    %c0_i32_0 = arith.constant 0 : i32
    %c0_i32_1 = arith.constant 0 : i32
    return %arg0, %c0_i32, %c0_i32_0 : i32, i32, i32
  }
  func.func @transform_3(%arg0: i32, %arg1: i32) -> (i32, i32, i32) {
    %c0_i32 = arith.constant 0 : i32
    %c0_i32_0 = arith.constant 0 : i32
    %c0_i32_1 = arith.constant 0 : i32
    return %arg1, %c0_i32, %c0_i32_0 : i32, i32, i32
  }
  func.func @transform_4(%arg0: i32, %arg1: i32) -> (i32, i32, i32) {
    %c0_i32 = arith.constant 0 : i32
    %c0_i32_0 = arith.constant 0 : i32
    %c0_i32_1 = arith.constant 0 : i32
    return %arg1, %c0_i32, %c0_i32_0 : i32, i32, i32
  }
  func.func @transform_5(%arg0: i32, %arg1: i32) -> (i32, i32, i32) {
    %c0_i32 = arith.constant 0 : i32
    %c0_i32_0 = arith.constant 0 : i32
    %c0_i32_1 = arith.constant 0 : i32
    return %arg1, %c0_i32, %c0_i32_0 : i32, i32, i32
  }
  func.func @transform_6(%arg0: i32, %arg1: i32) -> (i32, i32, i32) {
    %c0_i32 = arith.constant 0 : i32
    %c0_i32_0 = arith.constant 0 : i32
    %c0_i32_1 = arith.constant 0 : i32
    return %arg1, %c0_i32, %c0_i32_0 : i32, i32, i32
  }
  func.func @transform_7(%arg0: i32, %arg1: i32) -> (i32, i32, i32) {
    %c0_i32 = arith.constant 0 : i32
    %c0_i32_0 = arith.constant 0 : i32
    %c0_i32_1 = arith.constant 0 : i32
    return %arg1, %c0_i32, %c0_i32_0 : i32, i32, i32
  }
  func.func @transform_8(%arg0: i32, %arg1: i32) -> (i32, i32, i32) {
    %c0_i32 = arith.constant 0 : i32
    %c0_i32_0 = arith.constant 0 : i32
    %c0_i32_1 = arith.constant 0 : i32
    return %arg1, %c0_i32, %c0_i32_0 : i32, i32, i32
  }
  func.func @transform_9(%arg0: i32, %arg1: i32) -> (i32, i32, i32) {
    %c0_i32 = arith.constant 0 : i32
    %c0_i32_0 = arith.constant 0 : i32
    %c0_i32_1 = arith.constant 0 : i32
    return %arg1, %c0_i32, %c0_i32_0 : i32, i32, i32
  }
  func.func @transform_10(%arg0: i32, %arg1: i32) -> (i32, i32, i32) {
    %c0_i32 = arith.constant 0 : i32
    %c0_i32_0 = arith.constant 0 : i32
    %c0_i32_1 = arith.constant 0 : i32
    return %arg1, %c0_i32, %c0_i32_0 : i32, i32, i32
  }
  func.func @transform_11(%arg0: i32, %arg1: i32) -> (i32, i32, i32) {
    %c0_i32 = arith.constant 0 : i32
    %c0_i32_0 = arith.constant 0 : i32
    %c0_i32_1 = arith.constant 0 : i32
    return %arg1, %c0_i32, %c0_i32_0 : i32, i32, i32
  }
  func.func @transform_12(%arg0: i32, %arg1: i32) -> (i32, i32, i32) {
    %c0_i32 = arith.constant 0 : i32
    %c0_i32_0 = arith.constant 0 : i32
    %c0_i32_1 = arith.constant 0 : i32
    return %arg1, %c0_i32, %c0_i32_0 : i32, i32, i32
  }
  func.func @transform_13(%arg0: i32, %arg1: i32) -> (i32, i32, i32) {
    %c0_i32 = arith.constant 0 : i32
    %c0_i32_0 = arith.constant 0 : i32
    %c0_i32_1 = arith.constant 0 : i32
    return %arg1, %c0_i32, %c0_i32_0 : i32, i32, i32
  }
  func.func @transform_14(%arg0: i32, %arg1: i32) -> (i32, i32, i32) {
    %c0_i32 = arith.constant 0 : i32
    %c0_i32_0 = arith.constant 0 : i32
    %c0_i32_1 = arith.constant 0 : i32
    return %arg1, %c0_i32, %c0_i32_0 : i32, i32, i32
  }
  func.func @transform_15(%arg0: i32, %arg1: i32) -> (i32, i32) {
    %c0_i32 = arith.constant 0 : i32
    %c0_i32_0 = arith.constant 0 : i32
    %c0_i32_1 = arith.constant 0 : i32
    return %c0_i32, %c0_i32_0 : i32, i32
  }
  func.func @transform_16(%arg0: i32, %arg1: i32) -> (i32, i32) {
    %c0_i32 = arith.constant 0 : i32
    %c0_i32_0 = arith.constant 0 : i32
    %c0_i32_1 = arith.constant 0 : i32
    return %c0_i32, %c0_i32_0 : i32, i32
  }
  func.func @transform_17(%arg0: i32, %arg1: i32) -> (i32, i32) {
    %c0_i32 = arith.constant 0 : i32
    %c0_i32_0 = arith.constant 0 : i32
    %c0_i32_1 = arith.constant 0 : i32
    return %c0_i32, %c0_i32_0 : i32, i32
  }
  func.func @transform_18(%arg0: i32, %arg1: i32) -> (i32, i32, i32) {
    %c0_i32 = arith.constant 0 : i32
    %c0_i32_0 = arith.constant 0 : i32
    %c0_i32_1 = arith.constant 0 : i32
    return %arg0, %c0_i32, %c0_i32_0 : i32, i32, i32
  }
}

</mosaic_0001>

<llo_original>
// kernel: text_encoder_forward.1
$region0: #{text_encoder_forward.1}
  #allocation0 [shape = 'u32[]', space=smem, size = 0x4, offset = 0x4, fixed_abs, tag = 'smem constant byte address 0x4 - core index']
  #allocation1 [shape = 'u32[144,128]{1,0:T(1,128)}', space=vmem, size = 0x12000, scoped, tag = 'internal scratch']
  #allocation2 [shape = 'f32[8,32]{1,0:T(8,128)}', space=vmem, size = 0x1000, scoped, tag = 'scratch operand']
  #allocation3 [shape = 'f32[8,32]{1,0:T(8,128)}', space=vmem, size = 0x1000, scoped, tag = 'scratch operand']
  %s0 = inlined_call_operand.vmem [shape: f32[2,8,32], index: 0, kind: input, shape index: {}]
  %s1 = inlined_call_operand.vmem [shape: f32[6,1,4,32], index: 1, kind: input, shape index: {}]
  %s2 = inlined_call_operand.vmem [shape: f32[2,1,8], index: 2, kind: input, shape index: {}]
  %s3 = inlined_call_operand.vmem [shape: f32[3,1,32], index: 3, kind: input, shape index: {}]
  %s4 = inlined_call_operand.vmem [shape: f32[3,1,32], index: 4, kind: input, shape index: {}]
  %s5 = inlined_call_operand.vmem [shape: bf16[3,32,96], index: 5, kind: input, shape index: {}]
  %s6 = inlined_call_operand.vmem [shape: f32[3,1,96], index: 6, kind: input, shape index: {}]
  %s7 = inlined_call_operand.vmem [shape: bf16[3,32,32], index: 7, kind: input, shape index: {}]
  %s8 = inlined_call_operand.vmem [shape: f32[3,1,32], index: 8, kind: input, shape index: {}]
  %s9 = inlined_call_operand.vmem [shape: f32[3,1,32], index: 9, kind: input, shape index: {}]
  %s10 = inlined_call_operand.vmem [shape: f32[3,1,32], index: 10, kind: input, shape index: {}]
  %s11 = inlined_call_operand.vmem [shape: bf16[3,32,128], index: 11, kind: input, shape index: {}]
  %s12 = inlined_call_operand.vmem [shape: f32[3,1,128], index: 12, kind: input, shape index: {}]
  %s13 = inlined_call_operand.vmem [shape: bf16[3,128,32], index: 13, kind: input, shape index: {}]
  %s14 = inlined_call_operand.vmem [shape: f32[3,1,32], index: 14, kind: input, shape index: {}]
  %s15 = inlined_call_operand.vmem [shape: f32[1,32], index: 15, kind: input, shape index: {}]
  %s16 = inlined_call_operand.vmem [shape: f32[1,32], index: 16, kind: input, shape index: {}]
  %s17 = inlined_call_operand.vmem [shape: bf16[32,128], index: 17, kind: input, shape index: {}]
  %s18 = inlined_call_operand.hbm [shape: f32[2,1,128], index: 18, kind: output, shape index: {}]
  %s19 = sld [smem:[#allocation0]]
  $region117: #{text_encoder_forward.1} parent=0
    _
  %s21 = ssub.s32 1, %s19
  %s22 = scalar_select 0, %s21, %s19
  $region1: #{text_encoder_forward.1} parent=0
    #allocation4 [shape = 'u8[1024]{0}', space=vmem, size = 0x400, scoped, tag = 'output window, operand 0']
    #allocation5 [shape = 's32[2]{0}', space=sflag, size = 0x8, scoped, tag = 'scoped memory for text_encoder_forward.1']
    %23 = vsyncpa [#allocation5], 0
    %s24 = scalar_lea.sflag [#allocation5], 1
    %25 = vsyncpa %s24, 0
    loop: start=0, step=1, limit=8
    $region2: #{text_encoder_forward.1} parent=1 // loop_pre_header
      _
    $region3: #{text_encoder_forward.1} parent=1 // loop_header
      %s27 = sphi 0, %s31
      %p28 = scmp.ge.s32.totalorder %s27, 8
      %s34 = sphi 0, %s46
      %s35 = sphi 0, %s42
      %s36 = sphi 0, %s34
      %s37 = sphi 0, %s35
      %s38 = sphi 0, %s36
      %s39 = sphi 0, %s37
      %s49 = sphi 0, %s51
      %s52 = sphi 0, %s49
      %s53 = sphi 0, %s52
      %s69 = sphi 0, %s53
      %s83 = sphi 0, %s85
      %s86 = sphi 0, %s83
      %s87 = sphi 0, %s86
      %s103 = sphi 0, %s87
      %s109 = sphi 0, %s111
      %s112 = sphi 0, %s109
      %s113 = sphi 0, %s112
      %s129 = sphi 0, %s113
      %s135 = sphi 0, %s137
      %s138 = sphi 0, %s135
      %s139 = sphi 0, %s138
      %s155 = sphi 0, %s139
      %s161 = sphi 0, %s163
      %s164 = sphi 0, %s161
      %s165 = sphi 0, %s164
      %s181 = sphi 0, %s165
      %s187 = sphi 0, %s189
      %s190 = sphi 0, %s187
      %s191 = sphi 0, %s190
      %s207 = sphi 0, %s191
      %s213 = sphi 0, %s215
      %s216 = sphi 0, %s213
      %s217 = sphi 0, %s216
      %s233 = sphi 0, %s217
      %s239 = sphi 0, %s241
      %s242 = sphi 0, %s239
      %s243 = sphi 0, %s242
      %s259 = sphi 0, %s243
      %s265 = sphi 0, %s267
      %s268 = sphi 0, %s265
      %s269 = sphi 0, %s268
      %s285 = sphi 0, %s269
      %s291 = sphi 0, %s293
      %s294 = sphi 0, %s291
      %s295 = sphi 0, %s294
      %s311 = sphi 0, %s295
      %s317 = sphi 0, %s319
      %s320 = sphi 0, %s317
      %s321 = sphi 0, %s320
      %s337 = sphi 0, %s321
      %s343 = sphi 0, %s345
      %s346 = sphi 0, %s343
      %s347 = sphi 0, %s346
      %s363 = sphi 0, %s347
      %s369 = sphi 0, %s371
      %s372 = sphi 0, %s369
      %s373 = sphi 0, %s372
      %s389 = sphi 0, %s373
      %s395 = sphi 0, %s397
      %s398 = sphi 0, %s395
      %s399 = sphi 0, %s398
      %s415 = sphi 0, %s399
      %s421 = sphi 0, %s423
      %s424 = sphi 0, %s421
      %s425 = sphi 0, %s424
      %s441 = sphi 0, %s425
      %s445 = sphi 0, %s445
      %s447 = sphi 0, %s445
      %s448 = sphi 0, %s447
      %s462 = sphi 0, %s448
      %s466 = sphi 0, %s466
      %s468 = sphi 0, %s466
      %s469 = sphi 0, %s468
      %s483 = sphi 0, %s469
      %s487 = sphi 0, %s487
      %s489 = sphi 0, %s487
      %s490 = sphi 0, %s489
      %s504 = sphi 0, %s490
      %s510 = sphi 0, %s512
      %s513 = sphi 0, %s510
      %s514 = sphi 0, %s513
      %s530 = sphi 0, %s514
    $region4: #{text_encoder_forward.1} parent=1 // loop_header_branch
      %30 = sbr.rel (%p28) target = $region8
    $region5: #{text_encoder_forward.1} parent=1 // loop_body
      %s32 = ssub.s32 %s27, 1
      %s33 = ssub.s32 %s27, 2
      %s40 = sadd.s32 1, %s35
      %p41 = scmp.ge.s32.totalorder %s40, 3
      %s42 = scalar_select %p41, 0, %s40
      %s43 = sadd.s32 1, %s34
      %s44 = scalar_select %p41, %s43, %s34
      %p45 = scmp.ge.s32.totalorder %s44, 2
      %s46 = scalar_select %p45, 0, %s44
      %s47 = ssub.s32 %s34, %s46
      %p48 = scmp.eq.s32.totalorder %s47, 0
      %s50 = sadd.s32 %s49, 1
      %s51 = scalar_select %p48, %s49, %s50
      %p54 = pneg %p48
      %p55 = scmp.eq.s32.totalorder %s27, 5
      %p56 = por %p54, %p55
      %p57 = scmp.ne.s32.totalorder %s49, %s52
      %p58 = scmp.eq.s32.totalorder %s27, 0
      %p59 = por %p57, %p58
      %p60 = scmp.ne.s32.totalorder %s49, %s52
      %p61 = scmp.eq.s32.totalorder %s32, 5
      %p62 = por %p60, %p61
      %p63 = scmp.ne.s32.totalorder %s52, %s53
      %p64 = scmp.eq.s32.totalorder %s32, 0
      %p65 = por %p63, %p64
      %p66 = scmp.ne.s32.totalorder %s52, %s53
      %p67 = scmp.eq.s32.totalorder %s33, 5
      %p68 = por %p66, %p67
      %p70 = scmp.ne.s32.totalorder %s53, %s69
      %p71 = scmp.eq.s32.totalorder %s33, 0
      %p72 = por %p70, %p71
      %p73 = scmp.lt.s32.totalorder %s35, 1
      %s74 = scalar_select %p73, %s35, 1
      %s75 = smul.u32 %s74, 2
      %s76 = sadd.s32 %s75, %s34
      %p77 = scmp.lt.s32.totalorder %s42, 1
      %s78 = scalar_select %p77, %s42, 1
      %s79 = smul.u32 %s78, 2
      %s80 = sadd.s32 %s79, %s46
      %s81 = ssub.s32 %s76, %s80
      %p82 = scmp.eq.s32.totalorder %s81, 0
      %s84 = sadd.s32 %s83, 1
      %s85 = scalar_select %p82, %s83, %s84
      %p88 = pneg %p82
      %p89 = scmp.eq.s32.totalorder %s27, 5
      %p90 = por %p88, %p89
      %p91 = scmp.ne.s32.totalorder %s83, %s86
      %p92 = scmp.eq.s32.totalorder %s27, 0
      %p93 = por %p91, %p92
      %p94 = scmp.ne.s32.totalorder %s83, %s86
      %p95 = scmp.eq.s32.totalorder %s32, 5
      %p96 = por %p94, %p95
      %p97 = scmp.ne.s32.totalorder %s86, %s87
      %p98 = scmp.eq.s32.totalorder %s32, 0
      %p99 = por %p97, %p98
      %p100 = scmp.ne.s32.totalorder %s86, %s87
      %p101 = scmp.eq.s32.totalorder %s33, 5
      %p102 = por %p100, %p101
      %p104 = scmp.ne.s32.totalorder %s87, %s103
      %p105 = scmp.eq.s32.totalorder %s33, 0
      %p106 = por %p104, %p105
      %s107 = ssub.s32 %s34, %s46
      %p108 = scmp.eq.s32.totalorder %s107, 0
      %s110 = sadd.s32 %s109, 1
      %s111 = scalar_select %p108, %s109, %s110
      %p114 = pneg %p108
      %p115 = scmp.eq.s32.totalorder %s27, 5
      %p116 = por %p114, %p115
      %p117 = scmp.ne.s32.totalorder %s109, %s112
      %p118 = scmp.eq.s32.totalorder %s27, 0
      %p119 = por %p117, %p118
      %p120 = scmp.ne.s32.totalorder %s109, %s112
      %p121 = scmp.eq.s32.totalorder %s32, 5
      %p122 = por %p120, %p121
      %p123 = scmp.ne.s32.totalorder %s112, %s113
      %p124 = scmp.eq.s32.totalorder %s32, 0
      %p125 = por %p123, %p124
      %p126 = scmp.ne.s32.totalorder %s112, %s113
      %p127 = scmp.eq.s32.totalorder %s33, 5
      %p128 = por %p126, %p127
      %p130 = scmp.ne.s32.totalorder %s113, %s129
      %p131 = scmp.eq.s32.totalorder %s33, 0
      %p132 = por %p130, %p131
      %s133 = ssub.s32 %s35, %s42
      %p134 = scmp.eq.s32.totalorder %s133, 0
      %s136 = sadd.s32 %s135, 1
      %s137 = scalar_select %p134, %s135, %s136
      %p140 = pneg %p134
      %p141 = scmp.eq.s32.totalorder %s27, 5
      %p142 = por %p140, %p141
      %p143 = scmp.ne.s32.totalorder %s135, %s138
      %p144 = scmp.eq.s32.totalorder %s27, 0
      %p145 = por %p143, %p144
      %p146 = scmp.ne.s32.totalorder %s135, %s138
      %p147 = scmp.eq.s32.totalorder %s32, 5
      %p148 = por %p146, %p147
      %p149 = scmp.ne.s32.totalorder %s138, %s139
      %p150 = scmp.eq.s32.totalorder %s32, 0
      %p151 = por %p149, %p150
      %p152 = scmp.ne.s32.totalorder %s138, %s139
      %p153 = scmp.eq.s32.totalorder %s33, 5
      %p154 = por %p152, %p153
      %p156 = scmp.ne.s32.totalorder %s139, %s155
      %p157 = scmp.eq.s32.totalorder %s33, 0
      %p158 = por %p156, %p157
      %s159 = ssub.s32 %s35, %s42
      %p160 = scmp.eq.s32.totalorder %s159, 0
      %s162 = sadd.s32 %s161, 1
      %s163 = scalar_select %p160, %s161, %s162
      %p166 = pneg %p160
      %p167 = scmp.eq.s32.totalorder %s27, 5
      %p168 = por %p166, %p167
      %p169 = scmp.ne.s32.totalorder %s161, %s164
      %p170 = scmp.eq.s32.totalorder %s27, 0
      %p171 = por %p169, %p170
      %p172 = scmp.ne.s32.totalorder %s161, %s164
      %p173 = scmp.eq.s32.totalorder %s32, 5
      %p174 = por %p172, %p173
      %p175 = scmp.ne.s32.totalorder %s164, %s165
      %p176 = scmp.eq.s32.totalorder %s32, 0
      %p177 = por %p175, %p176
      %p178 = scmp.ne.s32.totalorder %s164, %s165
      %p179 = scmp.eq.s32.totalorder %s33, 5
      %p180 = por %p178, %p179
      %p182 = scmp.ne.s32.totalorder %s165, %s181
      %p183 = scmp.eq.s32.totalorder %s33, 0
      %p184 = por %p182, %p183
      %s185 = ssub.s32 %s35, %s42
      %p186 = scmp.eq.s32.totalorder %s185, 0
      %s188 = sadd.s32 %s187, 1
      %s189 = scalar_select %p186, %s187, %s188
      %p192 = pneg %p186
      %p193 = scmp.eq.s32.totalorder %s27, 5
      %p194 = por %p192, %p193
      %p195 = scmp.ne.s32.totalorder %s187, %s190
      %p196 = scmp.eq.s32.totalorder %s27, 0
      %p197 = por %p195, %p196
      %p198 = scmp.ne.s32.totalorder %s187, %s190
      %p199 = scmp.eq.s32.totalorder %s32, 5
      %p200 = por %p198, %p199
      %p201 = scmp.ne.s32.totalorder %s190, %s191
      %p202 = scmp.eq.s32.totalorder %s32, 0
      %p203 = por %p201, %p202
      %p204 = scmp.ne.s32.totalorder %s190, %s191
      %p205 = scmp.eq.s32.totalorder %s33, 5
      %p206 = por %p204, %p205
      %p208 = scmp.ne.s32.totalorder %s191, %s207
      %p209 = scmp.eq.s32.totalorder %s33, 0
      %p210 = por %p208, %p209
      %s211 = ssub.s32 %s35, %s42
      %p212 = scmp.eq.s32.totalorder %s211, 0
      %s214 = sadd.s32 %s213, 1
      %s215 = scalar_select %p212, %s213, %s214
      %p218 = pneg %p212
      %p219 = scmp.eq.s32.totalorder %s27, 5
      %p220 = por %p218, %p219
      %p221 = scmp.ne.s32.totalorder %s213, %s216
      %p222 = scmp.eq.s32.totalorder %s27, 0
      %p223 = por %p221, %p222
      %p224 = scmp.ne.s32.totalorder %s213, %s216
      %p225 = scmp.eq.s32.totalorder %s32, 5
      %p226 = por %p224, %p225
      %p227 = scmp.ne.s32.totalorder %s216, %s217
      %p228 = scmp.eq.s32.totalorder %s32, 0
      %p229 = por %p227, %p228
      %p230 = scmp.ne.s32.totalorder %s216, %s217
      %p231 = scmp.eq.s32.totalorder %s33, 5
      %p232 = por %p230, %p231
      %p234 = scmp.ne.s32.totalorder %s217, %s233
      %p235 = scmp.eq.s32.totalorder %s33, 0
      %p236 = por %p234, %p235
      %s237 = ssub.s32 %s35, %s42
      %p238 = scmp.eq.s32.totalorder %s237, 0
      %s240 = sadd.s32 %s239, 1
      %s241 = scalar_select %p238, %s239, %s240
      %p244 = pneg %p238
      %p245 = scmp.eq.s32.totalorder %s27, 5
      %p246 = por %p244, %p245
      %p247 = scmp.ne.s32.totalorder %s239, %s242
      %p248 = scmp.eq.s32.totalorder %s27, 0
      %p249 = por %p247, %p248
      %p250 = scmp.ne.s32.totalorder %s239, %s242
      %p251 = scmp.eq.s32.totalorder %s32, 5
      %p252 = por %p250, %p251
      %p253 = scmp.ne.s32.totalorder %s242, %s243
      %p254 = scmp.eq.s32.totalorder %s32, 0
      %p255 = por %p253, %p254
      %p256 = scmp.ne.s32.totalorder %s242, %s243
      %p257 = scmp.eq.s32.totalorder %s33, 5
      %p258 = por %p256, %p257
      %p260 = scmp.ne.s32.totalorder %s243, %s259
      %p261 = scmp.eq.s32.totalorder %s33, 0
      %p262 = por %p260, %p261
      %s263 = ssub.s32 %s35, %s42
      %p264 = scmp.eq.s32.totalorder %s263, 0
      %s266 = sadd.s32 %s265, 1
      %s267 = scalar_select %p264, %s265, %s266
      %p270 = pneg %p264
      %p271 = scmp.eq.s32.totalorder %s27, 5
      %p272 = por %p270, %p271
      %p273 = scmp.ne.s32.totalorder %s265, %s268
      %p274 = scmp.eq.s32.totalorder %s27, 0
      %p275 = por %p273, %p274
      %p276 = scmp.ne.s32.totalorder %s265, %s268
      %p277 = scmp.eq.s32.totalorder %s32, 5
      %p278 = por %p276, %p277
      %p279 = scmp.ne.s32.totalorder %s268, %s269
      %p280 = scmp.eq.s32.totalorder %s32, 0
      %p281 = por %p279, %p280
      %p282 = scmp.ne.s32.totalorder %s268, %s269
      %p283 = scmp.eq.s32.totalorder %s33, 5
      %p284 = por %p282, %p283
      %p286 = scmp.ne.s32.totalorder %s269, %s285
      %p287 = scmp.eq.s32.totalorder %s33, 0
      %p288 = por %p286, %p287
      %s289 = ssub.s32 %s35, %s42
      %p290 = scmp.eq.s32.totalorder %s289, 0
      %s292 = sadd.s32 %s291, 1
      %s293 = scalar_select %p290, %s291, %s292
      %p296 = pneg %p290
      %p297 = scmp.eq.s32.totalorder %s27, 5
      %p298 = por %p296, %p297
      %p299 = scmp.ne.s32.totalorder %s291, %s294
      %p300 = scmp.eq.s32.totalorder %s27, 0
      %p301 = por %p299, %p300
      %p302 = scmp.ne.s32.totalorder %s291, %s294
      %p303 = scmp.eq.s32.totalorder %s32, 5
      %p304 = por %p302, %p303
      %p305 = scmp.ne.s32.totalorder %s294, %s295
      %p306 = scmp.eq.s32.totalorder %s32, 0
      %p307 = por %p305, %p306
      %p308 = scmp.ne.s32.totalorder %s294, %s295
      %p309 = scmp.eq.s32.totalorder %s33, 5
      %p310 = por %p308, %p309
      %p312 = scmp.ne.s32.totalorder %s295, %s311
      %p313 = scmp.eq.s32.totalorder %s33, 0
      %p314 = por %p312, %p313
      %s315 = ssub.s32 %s35, %s42
      %p316 = scmp.eq.s32.totalorder %s315, 0
      %s318 = sadd.s32 %s317, 1
      %s319 = scalar_select %p316, %s317, %s318
      %p322 = pneg %p316
      %p323 = scmp.eq.s32.totalorder %s27, 5
      %p324 = por %p322, %p323
      %p325 = scmp.ne.s32.totalorder %s317, %s320
      %p326 = scmp.eq.s32.totalorder %s27, 0
      %p327 = por %p325, %p326
      %p328 = scmp.ne.s32.totalorder %s317, %s320
      %p329 = scmp.eq.s32.totalorder %s32, 5
      %p330 = por %p328, %p329
      %p331 = scmp.ne.s32.totalorder %s320, %s321
      %p332 = scmp.eq.s32.totalorder %s32, 0
      %p333 = por %p331, %p332
      %p334 = scmp.ne.s32.totalorder %s320, %s321
      %p335 = scmp.eq.s32.totalorder %s33, 5
      %p336 = por %p334, %p335
      %p338 = scmp.ne.s32.totalorder %s321, %s337
      %p339 = scmp.eq.s32.totalorder %s33, 0
      %p340 = por %p338, %p339
      %s341 = ssub.s32 %s35, %s42
      %p342 = scmp.eq.s32.totalorder %s341, 0
      %s344 = sadd.s32 %s343, 1
      %s345 = scalar_select %p342, %s343, %s344
      %p348 = pneg %p342
      %p349 = scmp.eq.s32.totalorder %s27, 5
      %p350 = por %p348, %p349
      %p351 = scmp.ne.s32.totalorder %s343, %s346
      %p352 = scmp.eq.s32.totalorder %s27, 0
      %p353 = por %p351, %p352
      %p354 = scmp.ne.s32.totalorder %s343, %s346
      %p355 = scmp.eq.s32.totalorder %s32, 5
      %p356 = por %p354, %p355
      %p357 = scmp.ne.s32.totalorder %s346, %s347
      %p358 = scmp.eq.s32.totalorder %s32, 0
      %p359 = por %p357, %p358
      %p360 = scmp.ne.s32.totalorder %s346, %s347
      %p361 = scmp.eq.s32.totalorder %s33, 5
      %p362 = por %p360, %p361
      %p364 = scmp.ne.s32.totalorder %s347, %s363
      %p365 = scmp.eq.s32.totalorder %s33, 0
      %p366 = por %p364, %p365
      %s367 = ssub.s32 %s35, %s42
      %p368 = scmp.eq.s32.totalorder %s367, 0
      %s370 = sadd.s32 %s369, 1
      %s371 = scalar_select %p368, %s369, %s370
      %p374 = pneg %p368
      %p375 = scmp.eq.s32.totalorder %s27, 5
      %p376 = por %p374, %p375
      %p377 = scmp.ne.s32.totalorder %s369, %s372
      %p378 = scmp.eq.s32.totalorder %s27, 0
      %p379 = por %p377, %p378
      %p380 = scmp.ne.s32.totalorder %s369, %s372
      %p381 = scmp.eq.s32.totalorder %s32, 5
      %p382 = por %p380, %p381
      %p383 = scmp.ne.s32.totalorder %s372, %s373
      %p384 = scmp.eq.s32.totalorder %s32, 0
      %p385 = por %p383, %p384
      %p386 = scmp.ne.s32.totalorder %s372, %s373
      %p387 = scmp.eq.s32.totalorder %s33, 5
      %p388 = por %p386, %p387
      %p390 = scmp.ne.s32.totalorder %s373, %s389
      %p391 = scmp.eq.s32.totalorder %s33, 0
      %p392 = por %p390, %p391
      %s393 = ssub.s32 %s35, %s42
      %p394 = scmp.eq.s32.totalorder %s393, 0
      %s396 = sadd.s32 %s395, 1
      %s397 = scalar_select %p394, %s395, %s396
      %p400 = pneg %p394
      %p401 = scmp.eq.s32.totalorder %s27, 5
      %p402 = por %p400, %p401
      %p403 = scmp.ne.s32.totalorder %s395, %s398
      %p404 = scmp.eq.s32.totalorder %s27, 0
      %p405 = por %p403, %p404
      %p406 = scmp.ne.s32.totalorder %s395, %s398
      %p407 = scmp.eq.s32.totalorder %s32, 5
      %p408 = por %p406, %p407
      %p409 = scmp.ne.s32.totalorder %s398, %s399
      %p410 = scmp.eq.s32.totalorder %s32, 0
      %p411 = por %p409, %p410
      %p412 = scmp.ne.s32.totalorder %s398, %s399
      %p413 = scmp.eq.s32.totalorder %s33, 5
      %p414 = por %p412, %p413
      %p416 = scmp.ne.s32.totalorder %s399, %s415
      %p417 = scmp.eq.s32.totalorder %s33, 0
      %p418 = por %p416, %p417
      %s419 = ssub.s32 %s35, %s42
      %p420 = scmp.eq.s32.totalorder %s419, 0
      %s422 = sadd.s32 %s421, 1
      %s423 = scalar_select %p420, %s421, %s422
      %p426 = pneg %p420
      %p427 = scmp.eq.s32.totalorder %s27, 5
      %p428 = por %p426, %p427
      %p429 = scmp.ne.s32.totalorder %s421, %s424
      %p430 = scmp.eq.s32.totalorder %s27, 0
      %p431 = por %p429, %p430
      %p432 = scmp.ne.s32.totalorder %s421, %s424
      %p433 = scmp.eq.s32.totalorder %s32, 5
      %p434 = por %p432, %p433
      %p435 = scmp.ne.s32.totalorder %s424, %s425
      %p436 = scmp.eq.s32.totalorder %s32, 0
      %p437 = por %p435, %p436
      %p438 = scmp.ne.s32.totalorder %s424, %s425
      %p439 = scmp.eq.s32.totalorder %s33, 5
      %p440 = por %p438, %p439
      %p442 = scmp.ne.s32.totalorder %s425, %s441
      %p443 = scmp.eq.s32.totalorder %s33, 0
      %p444 = por %p442, %p443
      %s446 = sadd.s32 %s445, 1
      %p449 = scmp.eq.s32.totalorder %s27, 5
      %p450 = scmp.ne.s32.totalorder %s445, %s447
      %p451 = scmp.eq.s32.totalorder %s27, 0
      %p452 = por %p450, %p451
      %p453 = scmp.ne.s32.totalorder %s445, %s447
      %p454 = scmp.eq.s32.totalorder %s32, 5
      %p455 = por %p453, %p454
      %p456 = scmp.ne.s32.totalorder %s447, %s448
      %p457 = scmp.eq.s32.totalorder %s32, 0
      %p458 = por %p456, %p457
      %p459 = scmp.ne.s32.totalorder %s447, %s448
      %p460 = scmp.eq.s32.totalorder %s33, 5
      %p461 = por %p459, %p460
      %p463 = scmp.ne.s32.totalorder %s448, %s462
      %p464 = scmp.eq.s32.totalorder %s33, 0
      %p465 = por %p463, %p464
      %s467 = sadd.s32 %s466, 1
      %p470 = scmp.eq.s32.totalorder %s27, 5
      %p471 = scmp.ne.s32.totalorder %s466, %s468
      %p472 = scmp.eq.s32.totalorder %s27, 0
      %p473 = por %p471, %p472
      %p474 = scmp.ne.s32.totalorder %s466, %s468
      %p475 = scmp.eq.s32.totalorder %s32, 5
      %p476 = por %p474, %p475
      %p477 = scmp.ne.s32.totalorder %s468, %s469
      %p478 = scmp.eq.s32.totalorder %s32, 0
      %p479 = por %p477, %p478
      %p480 = scmp.ne.s32.totalorder %s468, %s469
      %p481 = scmp.eq.s32.totalorder %s33, 5
      %p482 = por %p480, %p481
      %p484 = scmp.ne.s32.totalorder %s469, %s483
      %p485 = scmp.eq.s32.totalorder %s33, 0
      %p486 = por %p484, %p485
      %s488 = sadd.s32 %s487, 1
      %p491 = scmp.eq.s32.totalorder %s27, 5
      %p492 = scmp.ne.s32.totalorder %s487, %s489
      %p493 = scmp.eq.s32.totalorder %s27, 0
      %p494 = por %p492, %p493
      %p495 = scmp.ne.s32.totalorder %s487, %s489
      %p496 = scmp.eq.s32.totalorder %s32, 5
      %p497 = por %p495, %p496
      %p498 = scmp.ne.s32.totalorder %s489, %s490
      %p499 = scmp.eq.s32.totalorder %s32, 0
      %p500 = por %p498, %p499
      %p501 = scmp.ne.s32.totalorder %s489, %s490
      %p502 = scmp.eq.s32.totalorder %s33, 5
      %p503 = por %p501, %p502
      %p505 = scmp.ne.s32.totalorder %s490, %s504
      %p506 = scmp.eq.s32.totalorder %s33, 0
      %p507 = por %p505, %p506
      %s508 = ssub.s32 %s34, %s46
      %p509 = scmp.eq.s32.totalorder %s508, 0
      %s511 = sadd.s32 %s510, 1
      %s512 = scalar_select %p509, %s510, %s511
      %p515 = pneg %p509
      %p516 = scmp.eq.s32.totalorder %s27, 5
      %p517 = por %p515, %p516
      %p518 = scmp.ne.s32.totalorder %s510, %s513
      %p519 = scmp.eq.s32.totalorder %s27, 0
      %p520 = por %p518, %p519
      %p521 = scmp.ne.s32.totalorder %s510, %s513
      %p522 = scmp.eq.s32.totalorder %s32, 5
      %p523 = por %p521, %p522
      %p524 = scmp.ne.s32.totalorder %s513, %s514
      %p525 = scmp.eq.s32.totalorder %s32, 0
      %p526 = por %p524, %p525
      %p527 = scmp.ne.s32.totalorder %s513, %s514
      %p528 = scmp.eq.s32.totalorder %s33, 5
      %p529 = por %p527, %p528
      %p531 = scmp.ne.s32.totalorder %s514, %s530
      %p532 = scmp.eq.s32.totalorder %s33, 0
      %p533 = por %p531, %p532
      %p534 = scmp.le.s32.totalorder 1, %s27
      %p535 = scmp.lt.s32.totalorder %s27, 7
      %p536 = pnand %p534, %p535
      %p537 = pneg %p536
      // Predicated region
      $region9: #{text_encoder_forward.1} parent=5 // pred_check
        _
      $region10: #{text_encoder_forward.1} parent=5 // pred_check_branch
        %539 = sbr.rel (%p536) target = $region12
      $region11: #{text_encoder_forward.1} parent=5 // pred_region
        %s540 = ssub.s32 %s27, 1
        // Predicated region
        $region13: #{text_encoder_forward.1} parent=11 // pred_check
          %p541 = pneg %p458
        $region14: #{text_encoder_forward.1} parent=11 // pred_check_branch
          %543 = sbr.rel (%p541) target = $region16
        $region15: #{text_encoder_forward.1} parent=11 // pred_region
          _
        $region16: #{text_encoder_forward.1} parent=11 // pred_fallthru
          _
        // Predicated region
        $region17: #{text_encoder_forward.1} parent=11 // pred_check
          %p544 = pneg %p479
        $region18: #{text_encoder_forward.1} parent=11 // pred_check_branch
          %546 = sbr.rel (%p544) target = $region20
        $region19: #{text_encoder_forward.1} parent=11 // pred_region
          _
        $region20: #{text_encoder_forward.1} parent=11 // pred_fallthru
          _
        // Predicated region
        $region21: #{text_encoder_forward.1} parent=11 // pred_check
          %p547 = pneg %p500
        $region22: #{text_encoder_forward.1} parent=11 // pred_check_branch
          %549 = sbr.rel (%p547) target = $region24
        $region23: #{text_encoder_forward.1} parent=11 // pred_region
          _
        $region24: #{text_encoder_forward.1} parent=11 // pred_fallthru
          _
      $region12: #{text_encoder_forward.1} parent=5 // pred_fallthru
        _
      %p550 = scmp.lt.s32.totalorder %s27, 6
      // Predicated region
      $region25: #{text_encoder_forward.1} parent=5 // pred_check
        %p551 = pneg %p550
      $region26: #{text_encoder_forward.1} parent=5 // pred_check_branch
        %553 = sbr.rel (%p551) target = $region28
      $region27: #{text_encoder_forward.1} parent=5 // pred_region
        // Predicated region
        $region29: #{text_encoder_forward.1} parent=27 // pred_check
          %p554 = pneg %p59
        $region30: #{text_encoder_forward.1} parent=27 // pred_check_branch
          %556 = sbr.rel (%p554) target = $region32
        $region31: #{text_encoder_forward.1} parent=27 // pred_region
          %p557 = scmp.lt.s32.totalorder %s34, 1
          %s558 = scalar_select %p557, %s34, 1
          %s559 = smul.addr %s558, 8
          %s560 = scalar_lea.vmem %s0, %s559
        $region32: #{text_encoder_forward.1} parent=27 // pred_fallthru
          _
        // Predicated region
        $region33: #{text_encoder_forward.1} parent=27 // pred_check
          %p561 = pneg %p93
        $region34: #{text_encoder_forward.1} parent=27 // pred_check_branch
          %563 = sbr.rel (%p561) target = $region36
        $region35: #{text_encoder_forward.1} parent=27 // pred_region
          %p564 = scmp.lt.s32.totalorder %s35, 1
          %s565 = scalar_select %p564, %s35, 1
          %s566 = smul.u32 %s565, 2
          %s567 = sadd.s32 %s566, %s34
          %p568 = scmp.lt.s32.totalorder %s567, 5
          %s569 = scalar_select %p568, %s567, 5
          %s570 = smul.addr %s569, 4
          %s571 = scalar_lea.vmem %s1, %s570
          %p572 = scmp.lt.s32.totalorder %s35, 1
          %s573 = scalar_select %p572, %s35, 1
          %s574 = smul.u32 %s573, 2
          %s575 = sadd.s32 %s574, %s34
        $region36: #{text_encoder_forward.1} parent=27 // pred_fallthru
          _
        // Predicated region
        $region37: #{text_encoder_forward.1} parent=27 // pred_check
          %p576 = pneg %p119
        $region38: #{text_encoder_forward.1} parent=27 // pred_check_branch
          %578 = sbr.rel (%p576) target = $region40
        $region39: #{text_encoder_forward.1} parent=27 // pred_region
          %p579 = scmp.lt.s32.totalorder %s34, 1
          %s580 = scalar_select %p579, %s34, 1
          %s581 = scalar_lea.vmem %s2, %s580
        $region40: #{text_encoder_forward.1} parent=27 // pred_fallthru
          _
        // Predicated region
        $region41: #{text_encoder_forward.1} parent=27 // pred_check
          %p582 = pneg %p145
        $region42: #{text_encoder_forward.1} parent=27 // pred_check_branch
          %584 = sbr.rel (%p582) target = $region44
        $region43: #{text_encoder_forward.1} parent=27 // pred_region
          %p585 = scmp.lt.s32.totalorder %s35, 2
          %s586 = scalar_select %p585, %s35, 2
          %s587 = scalar_lea.vmem %s3, %s586
        $region44: #{text_encoder_forward.1} parent=27 // pred_fallthru
          _
        // Predicated region
        $region45: #{text_encoder_forward.1} parent=27 // pred_check
          %p588 = pneg %p171
        $region46: #{text_encoder_forward.1} parent=27 // pred_check_branch
          %590 = sbr.rel (%p588) target = $region48
        $region47: #{text_encoder_forward.1} parent=27 // pred_region
          %p591 = scmp.lt.s32.totalorder %s35, 2
          %s592 = scalar_select %p591, %s35, 2
          %s593 = scalar_lea.vmem %s4, %s592
        $region48: #{text_encoder_forward.1} parent=27 // pred_fallthru
          _
        // Predicated region
        $region49: #{text_encoder_forward.1} parent=27 // pred_check
          %p594 = pneg %p197
        $region50: #{text_encoder_forward.1} parent=27 // pred_check_branch
          %596 = sbr.rel (%p594) target = $region52
        $region51: #{text_encoder_forward.1} parent=27 // pred_region
          %p597 = scmp.lt.s32.totalorder %s35, 2
          %s598 = scalar_select %p597, %s35, 2
          %s599 = smul.addr %s598, 4
          %s600 = smul.addr %s599, 4
          %s601 = scalar_lea.vmem %s5, %s600
        $region52: #{text_encoder_forward.1} parent=27 // pred_fallthru
          _
        // Predicated region
        $region53: #{text_encoder_forward.1} parent=27 // pred_check
          %p602 = pneg %p223
        $region54: #{text_encoder_forward.1} parent=27 // pred_check_branch
          %604 = sbr.rel (%p602) target = $region56
        $region55: #{text_encoder_forward.1} parent=27 // pred_region
          %p605 = scmp.lt.s32.totalorder %s35, 2
          %s606 = scalar_select %p605, %s35, 2
          %s607 = scalar_lea.vmem %s6, %s606
        $region56: #{text_encoder_forward.1} parent=27 // pred_fallthru
          _
        // Predicated region
        $region57: #{text_encoder_forward.1} parent=27 // pred_check
          %p608 = pneg %p249
        $region58: #{text_encoder_forward.1} parent=27 // pred_check_branch
          %610 = sbr.rel (%p608) target = $region60
        $region59: #{text_encoder_forward.1} parent=27 // pred_region
          %p611 = scmp.lt.s32.totalorder %s35, 2
          %s612 = scalar_select %p611, %s35, 2
          %s613 = smul.addr %s612, 4
          %s614 = smul.addr %s613, 4
          %s615 = scalar_lea.vmem %s7, %s614
        $region60: #{text_encoder_forward.1} parent=27 // pred_fallthru
          _
        // Predicated region
        $region61: #{text_encoder_forward.1} parent=27 // pred_check
          %p616 = pneg %p275
        $region62: #{text_encoder_forward.1} parent=27 // pred_check_branch
          %618 = sbr.rel (%p616) target = $region64
        $region63: #{text_encoder_forward.1} parent=27 // pred_region
          %p619 = scmp.lt.s32.totalorder %s35, 2
          %s620 = scalar_select %p619, %s35, 2
          %s621 = scalar_lea.vmem %s8, %s620
        $region64: #{text_encoder_forward.1} parent=27 // pred_fallthru
          _
        // Predicated region
        $region65: #{text_encoder_forward.1} parent=27 // pred_check
          %p622 = pneg %p301
        $region66: #{text_encoder_forward.1} parent=27 // pred_check_branch
          %624 = sbr.rel (%p622) target = $region68
        $region67: #{text_encoder_forward.1} parent=27 // pred_region
          %p625 = scmp.lt.s32.totalorder %s35, 2
          %s626 = scalar_select %p625, %s35, 2
          %s627 = scalar_lea.vmem %s9, %s626
        $region68: #{text_encoder_forward.1} parent=27 // pred_fallthru
          _
        // Predicated region
        $region69: #{text_encoder_forward.1} parent=27 // pred_check
          %p628 = pneg %p327
        $region70: #{text_encoder_forward.1} parent=27 // pred_check_branch
          %630 = sbr.rel (%p628) target = $region72
        $region71: #{text_encoder_forward.1} parent=27 // pred_region
          %p631 = scmp.lt.s32.totalorder %s35, 2
          %s632 = scalar_select %p631, %s35, 2
          %s633 = scalar_lea.vmem %s10, %s632
        $region72: #{text_encoder_forward.1} parent=27 // pred_fallthru
          _
        // Predicated region
        $region73: #{text_encoder_forward.1} parent=27 // pred_check
          %p634 = pneg %p353
        $region74: #{text_encoder_forward.1} parent=27 // pred_check_branch
          %636 = sbr.rel (%p634) target = $region76
        $region75: #{text_encoder_forward.1} parent=27 // pred_region
          %p637 = scmp.lt.s32.totalorder %s35, 2
          %s638 = scalar_select %p637, %s35, 2
          %s639 = smul.addr %s638, 4
          %s640 = smul.addr %s639, 4
          %s641 = scalar_lea.vmem %s11, %s640
        $region76: #{text_encoder_forward.1} parent=27 // pred_fallthru
          _
        // Predicated region
        $region77: #{text_encoder_forward.1} parent=27 // pred_check
          %p642 = pneg %p379
        $region78: #{text_encoder_forward.1} parent=27 // pred_check_branch
          %644 = sbr.rel (%p642) target = $region80
        $region79: #{text_encoder_forward.1} parent=27 // pred_region
          %p645 = scmp.lt.s32.totalorder %s35, 2
          %s646 = scalar_select %p645, %s35, 2
          %s647 = scalar_lea.vmem %s12, %s646
        $region80: #{text_encoder_forward.1} parent=27 // pred_fallthru
          _
        // Predicated region
        $region81: #{text_encoder_forward.1} parent=27 // pred_check
          %p648 = pneg %p405
        $region82: #{text_encoder_forward.1} parent=27 // pred_check_branch
          %650 = sbr.rel (%p648) target = $region84
        $region83: #{text_encoder_forward.1} parent=27 // pred_region
          %p651 = scmp.lt.s32.totalorder %s35, 2
          %s652 = scalar_select %p651, %s35, 2
          %s653 = smul.addr %s652, 16
          %s654 = smul.addr %s653, 4
          %s655 = scalar_lea.vmem %s13, %s654
        $region84: #{text_encoder_forward.1} parent=27 // pred_fallthru
          _
        // Predicated region
        $region85: #{text_encoder_forward.1} parent=27 // pred_check
          %p656 = pneg %p431
        $region86: #{text_encoder_forward.1} parent=27 // pred_check_branch
          %658 = sbr.rel (%p656) target = $region88
        $region87: #{text_encoder_forward.1} parent=27 // pred_region
          %p659 = scmp.lt.s32.totalorder %s35, 2
          %s660 = scalar_select %p659, %s35, 2
          %s661 = scalar_lea.vmem %s14, %s660
        $region88: #{text_encoder_forward.1} parent=27 // pred_fallthru
          _
      $region28: #{text_encoder_forward.1} parent=5 // pred_fallthru
        _
      %p662 = scmp.le.s32.totalorder 1, %s27
      %p663 = scmp.lt.s32.totalorder %s27, 7
      %p664 = pnand %p662, %p663
      %p665 = pneg %p664
      // Predicated region
      $region89: #{text_encoder_forward.1} parent=5 // pred_check
        _
      $region90: #{text_encoder_forward.1} parent=5 // pred_check_branch
        %667 = sbr.rel (%p664) target = $region92
      $region91: #{text_encoder_forward.1} parent=5 // pred_region
        %s668 = ssub.s32 %s27, 1
        %p669 = scmp.lt.s32.totalorder %s36, 1
        %s670 = scalar_select %p669, %s36, 1
        %s671 = smul.addr %s670, 8
        %s672 = scalar_lea.vmem %s0, %s671
        %p673 = pneg %p65
        %p674 = pneg %p62
        %p675 = scmp.lt.s32.totalorder %s37, 1
        %s676 = scalar_select %p675, %s37, 1
        %s677 = smul.u32 %s676, 2
        %s678 = sadd.s32 %s677, %s36
        %p679 = scmp.lt.s32.totalorder %s678, 5
        %s680 = scalar_select %p679, %s678, 5
        %s681 = smul.addr %s680, 4
        %s682 = scalar_lea.vmem %s1, %s681
        %p683 = pneg %p99
        %p684 = pneg %p96
        %p685 = scmp.lt.s32.totalorder %s36, 1
        %s686 = scalar_select %p685, %s36, 1
        %s687 = scalar_lea.vmem %s2, %s686
        %p688 = pneg %p125
        %p689 = pneg %p122
        %p690 = scmp.lt.s32.totalorder %s37, 2
        %s691 = scalar_select %p690, %s37, 2
        %s692 = scalar_lea.vmem %s3, %s691
        %p693 = pneg %p151
        %p694 = pneg %p148
        %p695 = scmp.lt.s32.totalorder %s37, 2
        %s696 = scalar_select %p695, %s37, 2
        %s697 = scalar_lea.vmem %s4, %s696
        %p698 = pneg %p177
        %p699 = pneg %p174
        %p700 = scmp.lt.s32.totalorder %s37, 2
        %s701 = scalar_select %p700, %s37, 2
        %s702 = smul.addr %s701, 4
        %s703 = smul.addr %s702, 4
        %s704 = scalar_lea.vmem %s5, %s703
        %p705 = pneg %p203
        %p706 = pneg %p200
        %p707 = scmp.lt.s32.totalorder %s37, 2
        %s708 = scalar_select %p707, %s37, 2
        %s709 = scalar_lea.vmem %s6, %s708
        %p710 = pneg %p229
        %p711 = pneg %p226
        %p712 = scmp.lt.s32.totalorder %s37, 2
        %s713 = scalar_select %p712, %s37, 2
        %s714 = smul.addr %s713, 4
        %s715 = smul.addr %s714, 4
        %s716 = scalar_lea.vmem %s7, %s715
        %p717 = pneg %p255
        %p718 = pneg %p252
        %p719 = scmp.lt.s32.totalorder %s37, 2
        %s720 = scalar_select %p719, %s37, 2
        %s721 = scalar_lea.vmem %s8, %s720
        %p722 = pneg %p281
        %p723 = pneg %p278
        %p724 = scmp.lt.s32.totalorder %s37, 2
        %s725 = scalar_select %p724, %s37, 2
        %s726 = scalar_lea.vmem %s9, %s725
        %p727 = pneg %p307
        %p728 = pneg %p304
        %p729 = scmp.lt.s32.totalorder %s37, 2
        %s730 = scalar_select %p729, %s37, 2
        %s731 = scalar_lea.vmem %s10, %s730
        %p732 = pneg %p333
        %p733 = pneg %p330
        %p734 = scmp.lt.s32.totalorder %s37, 2
        %s735 = scalar_select %p734, %s37, 2
        %s736 = smul.addr %s735, 4
        %s737 = smul.addr %s736, 4
        %s738 = scalar_lea.vmem %s11, %s737
        %p739 = pneg %p359
        %p740 = pneg %p356
        %p741 = scmp.lt.s32.totalorder %s37, 2
        %s742 = scalar_select %p741, %s37, 2
        %s743 = scalar_lea.vmem %s12, %s742
        %p744 = pneg %p385
        %p745 = pneg %p382
        %p746 = scmp.lt.s32.totalorder %s37, 2
        %s747 = scalar_select %p746, %s37, 2
        %s748 = smul.addr %s747, 16
        %s749 = smul.addr %s748, 4
        %s750 = scalar_lea.vmem %s13, %s749
        %p751 = pneg %p411
        %p752 = pneg %p408
        %p753 = scmp.lt.s32.totalorder %s37, 2
        %s754 = scalar_select %p753, %s37, 2
        %s755 = scalar_lea.vmem %s14, %s754
        %p756 = pneg %p437
        %p757 = pneg %p434
        %p758 = pneg %p458
        %p759 = pneg %p455
        %p760 = pneg %p479
        %p761 = pneg %p476
        %p762 = pneg %p500
        %p763 = pneg %p497
        %p764 = pneg %p526
        %p765 = pneg %p523
        %s766 = sand.u32 %s513, 1
        %s767 = scalar_lea.sflag [#allocation5], %s766
        %s768 = sand.u32 %s513, 1
        %s769 = scalar_lea.vmem [#allocation4], %s768
        %p770 = scmp.lt.s32.totalorder %s36, 1
        %s771 = scalar_select %p770, %s36, 1
        %s772 = smul.addr %s771, 8
        %s773 = scalar_lea.vmem %s0, %s772
        %p774 = scmp.lt.s32.totalorder %s37, 1
        %s775 = scalar_select %p774, %s37, 1
        %s776 = smul.u32 %s775, 2
        %s777 = sadd.s32 %s776, %s36
        %p778 = scmp.lt.s32.totalorder %s777, 5
        %s779 = scalar_select %p778, %s777, 5
        %s780 = smul.addr %s779, 4
        %s781 = scalar_lea.vmem %s1, %s780
        %p782 = scmp.lt.s32.totalorder %s37, 1
        %s783 = scalar_select %p782, %s37, 1
        %s784 = smul.u32 %s783, 2
        %s785 = sadd.s32 %s784, %s36
        %p786 = scmp.lt.s32.totalorder %s36, 1
        %s787 = scalar_select %p786, %s36, 1
        %s788 = scalar_lea.vmem %s2, %s787
        %p789 = scmp.lt.s32.totalorder %s37, 2
        %s790 = scalar_select %p789, %s37, 2
        %s791 = scalar_lea.vmem %s3, %s790
        %p792 = scmp.lt.s32.totalorder %s37, 2
        %s793 = scalar_select %p792, %s37, 2
        %s794 = scalar_lea.vmem %s4, %s793
        %p795 = scmp.lt.s32.totalorder %s37, 2
        %s796 = scalar_select %p795, %s37, 2
        %s797 = smul.addr %s796, 4
        %s798 = smul.addr %s797, 4
        %s799 = scalar_lea.vmem %s5, %s798
        %p800 = scmp.lt.s32.totalorder %s37, 2
        %s801 = scalar_select %p800, %s37, 2
        %s802 = scalar_lea.vmem %s6, %s801
        %p803 = scmp.lt.s32.totalorder %s37, 2
        %s804 = scalar_select %p803, %s37, 2
        %s805 = smul.addr %s804, 4
        %s806 = smul.addr %s805, 4
        %s807 = scalar_lea.vmem %s7, %s806
        %p808 = scmp.lt.s32.totalorder %s37, 2
        %s809 = scalar_select %p808, %s37, 2
        %s810 = scalar_lea.vmem %s8, %s809
        %p811 = scmp.lt.s32.totalorder %s37, 2
        %s812 = scalar_select %p811, %s37, 2
        %s813 = scalar_lea.vmem %s9, %s812
        %p814 = scmp.lt.s32.totalorder %s37, 2
        %s815 = scalar_select %p814, %s37, 2
        %s816 = scalar_lea.vmem %s10, %s815
        %p817 = scmp.lt.s32.totalorder %s37, 2
        %s818 = scalar_select %p817, %s37, 2
        %s819 = smul.addr %s818, 4
        %s820 = smul.addr %s819, 4
        %s821 = scalar_lea.vmem %s11, %s820
        %p822 = scmp.lt.s32.totalorder %s37, 2
        %s823 = scalar_select %p822, %s37, 2
        %s824 = scalar_lea.vmem %s12, %s823
        %p825 = scmp.lt.s32.totalorder %s37, 2
        %s826 = scalar_select %p825, %s37, 2
        %s827 = smul.addr %s826, 16
        %s828 = smul.addr %s827, 4
        %s829 = scalar_lea.vmem %s13, %s828
        %p830 = scmp.lt.s32.totalorder %s37, 2
        %s831 = scalar_select %p830, %s37, 2
        %s832 = scalar_lea.vmem %s14, %s831
        %p834 = scmp.eq.s32.totalorder %s37, 0
        // Predicated region
        $region93: #{text_encoder_forward.1} parent=91 // pred_check
          %p835 = pneg %p834
        $region94: #{text_encoder_forward.1} parent=91 // pred_check_branch
          %837 = sbr.rel (%p835) target = $region96
        $region95: #{text_encoder_forward.1} parent=91 // pred_region
          %v838 = vld [vmem:[%s773] sm:$0xff]
          %vm839 = vcmask 261120
          %840 = vst.msk [vmem:[#allocation2] sm:$0xff] %vm839, %v838
        $region96: #{text_encoder_forward.1} parent=91 // pred_fallthru
          _
        %p841 = scmp.ge.s32.totalorder %s37, 1
        %p842 = scmp.lt.s32.totalorder %s37, 2
        %p843 = pnand %p841, %p842
        %p844 = pneg %p843
        // Predicated region
        $region97: #{text_encoder_forward.1} parent=91 // pred_check
          _
        $region98: #{text_encoder_forward.1} parent=91 // pred_check_branch
          %846 = sbr.rel (%p843) target = $region100
        $region99: #{text_encoder_forward.1} parent=91 // pred_region
          %v847 = vld [vmem:[%s781] sm:$0xf]
          %vm848 = vcmask 257024
          %849 = vst.msk [vmem:[#allocation2 + $0x1] sm:$0xf] %vm848, %v847
        $region100: #{text_encoder_forward.1} parent=91 // pred_fallthru
          _
        %v850 = vld [vmem:[#allocation2] sm:$0xff]
        %v851 = vld [vmem:[%s791] sm:$0x1]
        %v852 = vld [vmem:[%s794] sm:$0x1]
        %vm853 = vcmask 261120
        %v854 = vsel %vm853, %v850, 0.0
        %855 = vadd.xlane.f32.xlu0 %v854
        %v856 = vpop.xlane.xlu0 %855
        %v857 = vrcp.pop 32.0
        %v858 = vmul.f32 %v856, %v857
        %v859 = vsub.f32 %v850, %v858
        %v860 = vmul.f32 %v859, %v859
        %v861 = vsel %vm853, %v860, 0.0
        %862 = vadd.xlane.f32.xlu0 %v861
        %v863 = vpop.xlane.xlu0 %862
        %v864 = vmul.f32 %v863, %v857
        %v865 = vadd.f32 %v864, 1e-05
        %v866 = vrsqrt.pop %v865
        %v867 = vmul.f32 %v859, %v866
        %v869 = vlaneseq
        %v870 = vshrl.u32 %v869, 7
        %v871 = vsub.s32 0, %v870
        %v872 = vrot.slane %v851, %v871
        %v874 = vmul.f32 %v867, %v872
        %v876 = vlaneseq
        %v877 = vshrl.u32 %v876, 7
        %v878 = vsub.s32 0, %v877
        %v879 = vrot.slane %v852, %v878
        %v881 = vadd.f32 %v874, %v879
        %v882 = vpack.c.bf16 %v881, %v881
        %v883 = vld [vmem:[%s799] sm:$0xf]
        %v884 = vld [vmem:[%s799 + $0x4] sm:$0xf]
        %v885 = vld [vmem:[%s799 + $0x8] sm:$0xf]
        %v886 = vld [vmem:[%s799 + $0xc] sm:$0xf]
        %v887 = vld [vmem:[%s802] sm:$0x1]
        %v889 = vlaneseq
        %v890 = vshrl.u32 %v889, 7
        %v891 = vsub.s32 0, %v890
        %v892 = vrot.slane %v887, %v891
        %v898 = vunpack.c.l.b16 %v883
        %v899 = vunpack.c.l.b16 %v884
        %v900 = vunpack.c.l.b16 %v885
        %v901 = vunpack.c.l.b16 %v886
        %v902 = vpack.c.b16 %v899, %v898
        %v903 = vpack.c.b16 %v901, %v900
        %v907 = vsel %vm853, %v882, 0
        %909 = vmatprep.subr.bf16.mxu0 0
        %910 = vmatpush1.bf16.msra.mxu0 %v902
        %911 = vmatprep.subr.bf16.mxu0 0
        %912 = vmatpush1.bf16.msra.mxu0 %v903
        %913 = vmatprep.subr.bf16.mxu0 0
        %914 = vmatpush1.bf16.msra.mxu0 0
        %915 = vmatprep.subr.bf16.mxu0 0
        %916 = vmatpush1.bf16.msra.mxu0 0
        %917 = vmatprep.subr.bf16.mxu0 0
        %918 = vmatpush1.bf16.msra.mxu0 0
        %919 = vmatprep.subr.bf16.mxu0 0
        %920 = vmatpush1.bf16.msra.mxu0 0
        %921 = vmatprep.subr.bf16.mxu0 0
        %922 = vmatpush1.bf16.msra.mxu0 0
        %923 = vmatprep.subr.bf16.mxu0 0
        %924 = vmatpush1.bf16.msra.mxu0 0
        %925 = vmatprep.subr.bf16.mxu0 0
        %926 = vmatpush1.bf16.msra.mxu0 0
        %927 = vmatprep.subr.bf16.mxu0 0
        %928 = vmatpush1.bf16.msra.mxu0 0
        %929 = vmatprep.subr.bf16.mxu0 0
        %930 = vmatpush1.bf16.msra.mxu0 0
        %931 = vmatprep.subr.bf16.mxu0 0
        %932 = vmatpush1.bf16.msra.mxu0 0
        %933 = vmatprep.subr.bf16.mxu0 0
        %934 = vmatpush1.bf16.msra.mxu0 0
        %935 = vmatprep.subr.bf16.mxu0 0
        %936 = vmatpush1.bf16.msra.mxu0 0
        %937 = vmatprep.subr.bf16.mxu0 0
        %938 = vmatpush1.bf16.msra.mxu0 0
        %939 = vmatprep.subr.bf16.mxu0 0
        %940 = vmatpush1.bf16.msra.mxu0 0
        %941 = vmatprep.mubr.bf16.mxu0 0
        %942 = vmatmul.mubr.bf16.gmra.mrb[0].mxu0 %v907
        %v943 = vpop.f32.mrb[0].mxu0
        %v944 = vadd.f32 %v892, %v943
        %v945 = vpop.f32.mrb[0].mxu0
        %v946 = vpop.f32.mrb[0].mxu0
        %v947 = vpop.f32.mrb[0].mxu0
        %948 = vdwg.mxu0
        %v949 = vlaneseq
        %v950 = vshrl.u32 %v949, 7
        %v951 = vlaneseq
        %v952 = vand.u32 %v951, 127
        %vm953 = vcmp.le.s32.totalorder %v952, %v950
        %v954 = vsel %vm953, 0.0, -1e+09
        %v955 = vpack.c.bf16 %v944, %v944
        %957 = vrot.lane.b32.xlu0 %v955, 96
        %v958 = vpop.permute.xlu0 %957
        %vm959 = vcmask 64512
        %v961 = vsel %vm959, %v955, 0
        %v964 = vsel %vm959, %v958, 0
        %966 = vmatprep.subr.bf16.mxu0 0
        %967 = vmatpush1.bf16.xpose.msra.mxu0 %v964
        %968 = vmatprep.subr.bf16.mxu0 0
        %969 = vmatpush1.bf16.xpose.msra.mxu0 0
        %970 = vmatprep.subr.bf16.mxu0 0
        %971 = vmatpush1.bf16.xpose.msra.mxu0 0
        %972 = vmatprep.subr.bf16.mxu0 0
        %973 = vmatpush1.bf16.xpose.msra.mxu0 0
        %974 = vmatprep.subr.bf16.mxu0 0
        %975 = vmatpush1.bf16.xpose.msra.mxu0 0
        %976 = vmatprep.subr.bf16.mxu0 0
        %977 = vmatpush1.bf16.xpose.msra.mxu0 0
        %978 = vmatprep.subr.bf16.mxu0 0
        %979 = vmatpush1.bf16.xpose.msra.mxu0 0
        %980 = vmatprep.subr.bf16.mxu0 0
        %981 = vmatpush1.bf16.xpose.msra.mxu0 0
        %982 = vmatprep.subr.bf16.mxu0 0
        %983 = vmatpush1.bf16.xpose.msra.mxu0 0
        %984 = vmatprep.subr.bf16.mxu0 0
        %985 = vmatpush1.bf16.xpose.msra.mxu0 0
        %986 = vmatprep.subr.bf16.mxu0 0
        %987 = vmatpush1.bf16.xpose.msra.mxu0 0
        %988 = vmatprep.subr.bf16.mxu0 0
        %989 = vmatpush1.bf16.xpose.msra.mxu0 0
        %990 = vmatprep.subr.bf16.mxu0 0
        %991 = vmatpush1.bf16.xpose.msra.mxu0 0
        %992 = vmatprep.subr.bf16.mxu0 0
        %993 = vmatpush1.bf16.xpose.msra.mxu0 0
        %994 = vmatprep.subr.bf16.mxu0 0
        %995 = vmatpush1.bf16.xpose.msra.mxu0 0
        %996 = vmatprep.subr.bf16.mxu0 0
        %997 = vmatpush1.bf16.xpose.msra.mxu0 0
        %998 = vmatprep.mubr.bf16.mxu0 0
        %999 = vmatmul.mubr.bf16.gmra.mrb[0].mxu0 %v961
        %v1000 = vpop.f32.mrb[0].mxu0
        %v1001 = vadd.f32 %v954, %v1000
        %v1002 = vpop.f32.mrb[0].mxu0
        %v1003 = vpop.f32.mrb[0].mxu0
        %v1004 = vpop.f32.mrb[0].mxu0
        %1005 = vdwg.mxu0
        %v1006 = vsel %vm959, %v1001, -inf
        %1007 = vmax.xlane.f32.xlu0 %v1006
        %v1008 = vpop.xlane.xlu0 %1007
        %v1009 = vsub.f32 %v1001, %v1008
        %v1010 = vmul.f32 %v1009, 1.442695
        %v1011 = vpow.pop %v1010
        %v1012 = vsel %vm959, %v1011, 0.0
        %1013 = vadd.xlane.f32.xlu0 %v1012
        %v1014 = vpop.xlane.xlu0 %1013
        %v1015 = vrcp.pop %v1014
        %v1016 = vmul.f32 %v1011, %v1015
        %v1017 = vpack.c.bf16 %v1016, %v1016
        %1018 = vrot.lane.b32.xlu0 %v955, 64
        %v1019 = vpop.permute.xlu0 %1018
        %v1021 = vsel %vm959, %v1017, 0
        %vm1023 = vcmask 1043456
        %v1025 = vsel %vm1023, %v1019, 0
        %1027 = vmatprep.subr.bf16.mxu0 0
        %1028 = vmatpush1.bf16.msra.mxu0 %v1025
        %1029 = vmatprep.subr.bf16.mxu0 0
        %1030 = vmatpush1.bf16.msra.mxu0 0
        %1031 = vmatprep.subr.bf16.mxu0 0
        %1032 = vmatpush1.bf16.msra.mxu0 0
        %1033 = vmatprep.subr.bf16.mxu0 0
        %1034 = vmatpush1.bf16.msra.mxu0 0
        %1035 = vmatprep.subr.bf16.mxu0 0
        %1036 = vmatpush1.bf16.msra.mxu0 0
        %1037 = vmatprep.subr.bf16.mxu0 0
        %1038 = vmatpush1.bf16.msra.mxu0 0
        %1039 = vmatprep.subr.bf16.mxu0 0
        %1040 = vmatpush1.bf16.msra.mxu0 0
        %1041 = vmatprep.subr.bf16.mxu0 0
        %1042 = vmatpush1.bf16.msra.mxu0 0
        %1043 = vmatprep.subr.bf16.mxu0 0
        %1044 = vmatpush1.bf16.msra.mxu0 0
        %1045 = vmatprep.subr.bf16.mxu0 0
        %1046 = vmatpush1.bf16.msra.mxu0 0
        %1047 = vmatprep.subr.bf16.mxu0 0
        %1048 = vmatpush1.bf16.msra.mxu0 0
        %1049 = vmatprep.subr.bf16.mxu0 0
        %1050 = vmatpush1.bf16.msra.mxu0 0
        %1051 = vmatprep.subr.bf16.mxu0 0
        %1052 = vmatpush1.bf16.msra.mxu0 0
        %1053 = vmatprep.subr.bf16.mxu0 0
        %1054 = vmatpush1.bf16.msra.mxu0 0
        %1055 = vmatprep.subr.bf16.mxu0 0
        %1056 = vmatpush1.bf16.msra.mxu0 0
        %1057 = vmatprep.subr.bf16.mxu0 0
        %1058 = vmatpush1.bf16.msra.mxu0 0
        %1059 = vmatprep.mubr.bf16.mxu0 0
        %1060 = vmatmul.mubr.bf16.gmra.mrb[0].mxu0 %v1021
        %v1061 = vpop.f32.mrb[0].mxu0
        %v1062 = vadd.f32 0.0, %v1061
        %v1063 = vpop.f32.mrb[0].mxu0
        %v1064 = vpop.f32.mrb[0].mxu0
        %v1065 = vpop.f32.mrb[0].mxu0
        %1066 = vdwg.mxu0
        %1067 = vst.msk [vmem:[#allocation3] sm:$0xff] %vm959, %v1062
        %1068 = vrot.lane.b32.xlu0 %v955, 120
        %v1069 = vpop.permute.xlu0 %1068
        %1070 = vrot.lane.b32.xlu0 %v955, 88
        %v1071 = vpop.permute.xlu0 %1070
        %v1073 = vsel %vm959, %v1069, 0
        %v1076 = vsel %vm959, %v1071, 0
        %1078 = vmatprep.subr.bf16.mxu0 0
        %1079 = vmatpush1.bf16.xpose.msra.mxu0 %v1076
        %1080 = vmatprep.subr.bf16.mxu0 0
        %1081 = vmatpush1.bf16.xpose.msra.mxu0 0
        %1082 = vmatprep.subr.bf16.mxu0 0
        %1083 = vmatpush1.bf16.xpose.msra.mxu0 0
        %1084 = vmatprep.subr.bf16.mxu0 0
        %1085 = vmatpush1.bf16.xpose.msra.mxu0 0
        %1086 = vmatprep.subr.bf16.mxu0 0
        %1087 = vmatpush1.bf16.xpose.msra.mxu0 0
        %1088 = vmatprep.subr.bf16.mxu0 0
        %1089 = vmatpush1.bf16.xpose.msra.mxu0 0
        %1090 = vmatprep.subr.bf16.mxu0 0
        %1091 = vmatpush1.bf16.xpose.msra.mxu0 0
        %1092 = vmatprep.subr.bf16.mxu0 0
        %1093 = vmatpush1.bf16.xpose.msra.mxu0 0
        %1094 = vmatprep.subr.bf16.mxu0 0
        %1095 = vmatpush1.bf16.xpose.msra.mxu0 0
        %1096 = vmatprep.subr.bf16.mxu0 0
        %1097 = vmatpush1.bf16.xpose.msra.mxu0 0
        %1098 = vmatprep.subr.bf16.mxu0 0
        %1099 = vmatpush1.bf16.xpose.msra.mxu0 0
        %1100 = vmatprep.subr.bf16.mxu0 0
        %1101 = vmatpush1.bf16.xpose.msra.mxu0 0
        %1102 = vmatprep.subr.bf16.mxu0 0
        %1103 = vmatpush1.bf16.xpose.msra.mxu0 0
        %1104 = vmatprep.subr.bf16.mxu0 0
        %1105 = vmatpush1.bf16.xpose.msra.mxu0 0
        %1106 = vmatprep.subr.bf16.mxu0 0
        %1107 = vmatpush1.bf16.xpose.msra.mxu0 0
        %1108 = vmatprep.subr.bf16.mxu0 0
        %1109 = vmatpush1.bf16.xpose.msra.mxu0 0
        %1110 = vmatprep.mubr.bf16.mxu0 0
        %1111 = vmatmul.mubr.bf16.gmra.mrb[0].mxu0 %v1073
        %v1112 = vpop.f32.mrb[0].mxu0
        %v1113 = vadd.f32 %v954, %v1112
        %v1114 = vpop.f32.mrb[0].mxu0
        %v1115 = vpop.f32.mrb[0].mxu0
        %v1116 = vpop.f32.mrb[0].mxu0
        %1117 = vdwg.mxu0
        %v1118 = vsel %vm959, %v1113, -inf
        %1119 = vmax.xlane.f32.xlu0 %v1118
        %v1120 = vpop.xlane.xlu0 %1119
        %v1121 = vsub.f32 %v1113, %v1120
        %v1122 = vmul.f32 %v1121, 1.442695
        %v1123 = vpow.pop %v1122
        %v1124 = vsel %vm959, %v1123, 0.0
        %1125 = vadd.xlane.f32.xlu0 %v1124
        %v1126 = vpop.xlane.xlu0 %1125
        %v1127 = vrcp.pop %v1126
        %v1128 = vmul.f32 %v1123, %v1127
        %v1129 = vpack.c.bf16 %v1128, %v1128
        %1130 = vrot.lane.b32.xlu0 %v955, 56
        %v1131 = vpop.permute.xlu0 %1130
        %v1133 = vsel %vm959, %v1129, 0
        %v1136 = vsel %vm1023, %v1131, 0
        %1138 = vmatprep.subr.bf16.mxu0 0
        %1139 = vmatpush1.bf16.msra.mxu0 %v1136
        %1140 = vmatprep.subr.bf16.mxu0 0
        %1141 = vmatpush1.bf16.msra.mxu0 0
        %1142 = vmatprep.subr.bf16.mxu0 0
        %1143 = vmatpush1.bf16.msra.mxu0 0
        %1144 = vmatprep.subr.bf16.mxu0 0
        %1145 = vmatpush1.bf16.msra.mxu0 0
        %1146 = vmatprep.subr.bf16.mxu0 0
        %1147 = vmatpush1.bf16.msra.mxu0 0
        %1148 = vmatprep.subr.bf16.mxu0 0
        %1149 = vmatpush1.bf16.msra.mxu0 0
        %1150 = vmatprep.subr.bf16.mxu0 0
        %1151 = vmatpush1.bf16.msra.mxu0 0
        %1152 = vmatprep.subr.bf16.mxu0 0
        %1153 = vmatpush1.bf16.msra.mxu0 0
        %1154 = vmatprep.subr.bf16.mxu0 0
        %1155 = vmatpush1.bf16.msra.mxu0 0
        %1156 = vmatprep.subr.bf16.mxu0 0
        %1157 = vmatpush1.bf16.msra.mxu0 0
        %1158 = vmatprep.subr.bf16.mxu0 0
        %1159 = vmatpush1.bf16.msra.mxu0 0
        %1160 = vmatprep.subr.bf16.mxu0 0
        %1161 = vmatpush1.bf16.msra.mxu0 0
        %1162 = vmatprep.subr.bf16.mxu0 0
        %1163 = vmatpush1.bf16.msra.mxu0 0
        %1164 = vmatprep.subr.bf16.mxu0 0
        %1165 = vmatpush1.bf16.msra.mxu0 0
        %1166 = vmatprep.subr.bf16.mxu0 0
        %1167 = vmatpush1.bf16.msra.mxu0 0
        %1168 = vmatprep.subr.bf16.mxu0 0
        %1169 = vmatpush1.bf16.msra.mxu0 0
        %1170 = vmatprep.mubr.bf16.mxu0 0
        %1171 = vmatmul.mubr.bf16.gmra.mrb[0].mxu0 %v1133
        %v1172 = vpop.f32.mrb[0].mxu0
        %v1173 = vadd.f32 0.0, %v1172
        %v1174 = vpop.f32.mrb[0].mxu0
        %v1175 = vpop.f32.mrb[0].mxu0
        %v1176 = vpop.f32.mrb[0].mxu0
        %1177 = vdwg.mxu0
        %1179 = vrot.lane.b32.xlu0 %v1173, 8
        %v1180 = vpop.permute.xlu0 %1179
        %vm1182 = vcmask 130112
        %1183 = vst.msk [vmem:[#allocation3] sm:$0xff] %vm1182, %v1180
        %1184 = vrot.lane.b32.xlu0 %v955, 112
        %v1185 = vpop.permute.xlu0 %1184
        %1186 = vrot.lane.b32.xlu0 %v955, 80
        %v1187 = vpop.permute.xlu0 %1186
        %v1189 = vsel %vm959, %v1185, 0
        %v1192 = vsel %vm959, %v1187, 0
        %1194 = vmatprep.subr.bf16.mxu0 0
        %1195 = vmatpush1.bf16.xpose.msra.mxu0 %v1192
        %1196 = vmatprep.subr.bf16.mxu0 0
        %1197 = vmatpush1.bf16.xpose.msra.mxu0 0
        %1198 = vmatprep.subr.bf16.mxu0 0
        %1199 = vmatpush1.bf16.xpose.msra.mxu0 0
        %1200 = vmatprep.subr.bf16.mxu0 0
        %1201 = vmatpush1.bf16.xpose.msra.mxu0 0
        %1202 = vmatprep.subr.bf16.mxu0 0
        %1203 = vmatpush1.bf16.xpose.msra.mxu0 0
        %1204 = vmatprep.subr.bf16.mxu0 0
        %1205 = vmatpush1.bf16.xpose.msra.mxu0 0
        %1206 = vmatprep.subr.bf16.mxu0 0
        %1207 = vmatpush1.bf16.xpose.msra.mxu0 0
        %1208 = vmatprep.subr.bf16.mxu0 0
        %1209 = vmatpush1.bf16.xpose.msra.mxu0 0
        %1210 = vmatprep.subr.bf16.mxu0 0
        %1211 = vmatpush1.bf16.xpose.msra.mxu0 0
        %1212 = vmatprep.subr.bf16.mxu0 0
        %1213 = vmatpush1.bf16.xpose.msra.mxu0 0
        %1214 = vmatprep.subr.bf16.mxu0 0
        %1215 = vmatpush1.bf16.xpose.msra.mxu0 0
        %1216 = vmatprep.subr.bf16.mxu0 0
        %1217 = vmatpush1.bf16.xpose.msra.mxu0 0
        %1218 = vmatprep.subr.bf16.mxu0 0
        %1219 = vmatpush1.bf16.xpose.msra.mxu0 0
        %1220 = vmatprep.subr.bf16.mxu0 0
        %1221 = vmatpush1.bf16.xpose.msra.mxu0 0
        %1222 = vmatprep.subr.bf16.mxu0 0
        %1223 = vmatpush1.bf16.xpose.msra.mxu0 0
        %1224 = vmatprep.subr.bf16.mxu0 0
        %1225 = vmatpush1.bf16.xpose.msra.mxu0 0
        %1226 = vmatprep.mubr.bf16.mxu0 0
        %1227 = vmatmul.mubr.bf16.gmra.mrb[0].mxu0 %v1189
        %v1228 = vpop.f32.mrb[0].mxu0
        %v1229 = vadd.f32 %v954, %v1228
        %v1230 = vpop.f32.mrb[0].mxu0
        %v1231 = vpop.f32.mrb[0].mxu0
        %v1232 = vpop.f32.mrb[0].mxu0
        %1233 = vdwg.mxu0
        %v1234 = vsel %vm959, %v1229, -inf
        %1235 = vmax.xlane.f32.xlu0 %v1234
        %v1236 = vpop.xlane.xlu0 %1235
        %v1237 = vsub.f32 %v1229, %v1236
        %v1238 = vmul.f32 %v1237, 1.442695
        %v1239 = vpow.pop %v1238
        %v1240 = vsel %vm959, %v1239, 0.0
        %1241 = vadd.xlane.f32.xlu0 %v1240
        %v1242 = vpop.xlane.xlu0 %1241
        %v1243 = vrcp.pop %v1242
        %v1244 = vmul.f32 %v1239, %v1243
        %v1245 = vpack.c.bf16 %v1244, %v1244
        %1246 = vrot.lane.b32.xlu0 %v955, 48
        %v1247 = vpop.permute.xlu0 %1246
        %v1249 = vsel %vm959, %v1245, 0
        %v1252 = vsel %vm1023, %v1247, 0
        %1254 = vmatprep.subr.bf16.mxu0 0
        %1255 = vmatpush1.bf16.msra.mxu0 %v1252
        %1256 = vmatprep.subr.bf16.mxu0 0
        %1257 = vmatpush1.bf16.msra.mxu0 0
        %1258 = vmatprep.subr.bf16.mxu0 0
        %1259 = vmatpush1.bf16.msra.mxu0 0
        %1260 = vmatprep.subr.bf16.mxu0 0
        %1261 = vmatpush1.bf16.msra.mxu0 0
        %1262 = vmatprep.subr.bf16.mxu0 0
        %1263 = vmatpush1.bf16.msra.mxu0 0
        %1264 = vmatprep.subr.bf16.mxu0 0
        %1265 = vmatpush1.bf16.msra.mxu0 0
        %1266 = vmatprep.subr.bf16.mxu0 0
        %1267 = vmatpush1.bf16.msra.mxu0 0
        %1268 = vmatprep.subr.bf16.mxu0 0
        %1269 = vmatpush1.bf16.msra.mxu0 0
        %1270 = vmatprep.subr.bf16.mxu0 0
        %1271 = vmatpush1.bf16.msra.mxu0 0
        %1272 = vmatprep.subr.bf16.mxu0 0
        %1273 = vmatpush1.bf16.msra.mxu0 0
        %1274 = vmatprep.subr.bf16.mxu0 0
        %1275 = vmatpush1.bf16.msra.mxu0 0
        %1276 = vmatprep.subr.bf16.mxu0 0
        %1277 = vmatpush1.bf16.msra.mxu0 0
        %1278 = vmatprep.subr.bf16.mxu0 0
        %1279 = vmatpush1.bf16.msra.mxu0 0
        %1280 = vmatprep.subr.bf16.mxu0 0
        %1281 = vmatpush1.bf16.msra.mxu0 0
        %1282 = vmatprep.subr.bf16.mxu0 0
        %1283 = vmatpush1.bf16.msra.mxu0 0
        %1284 = vmatprep.subr.bf16.mxu0 0
        %1285 = vmatpush1.bf16.msra.mxu0 0
        %1286 = vmatprep.mubr.bf16.mxu0 0
        %1287 = vmatmul.mubr.bf16.gmra.mrb[0].mxu0 %v1249
        %v1288 = vpop.f32.mrb[0].mxu0
        %v1289 = vadd.f32 0.0, %v1288
        %v1290 = vpop.f32.mrb[0].mxu0
        %v1291 = vpop.f32.mrb[0].mxu0
        %v1292 = vpop.f32.mrb[0].mxu0
        %1293 = vdwg.mxu0
        %1295 = vrot.lane.b32.xlu0 %v1289, 16
        %v1296 = vpop.permute.xlu0 %1295
        %vm1298 = vcmask 195712
        %1299 = vst.msk [vmem:[#allocation3] sm:$0xff] %vm1298, %v1296
        %1300 = vrot.lane.b32.xlu0 %v955, 104
        %v1301 = vpop.permute.xlu0 %1300
        %1302 = vrot.lane.b32.xlu0 %v955, 72
        %v1303 = vpop.permute.xlu0 %1302
        %v1305 = vsel %vm959, %v1301, 0
        %v1308 = vsel %vm959, %v1303, 0
        %1310 = vmatprep.subr.bf16.mxu0 0
        %1311 = vmatpush1.bf16.xpose.msra.mxu0 %v1308
        %1312 = vmatprep.subr.bf16.mxu0 0
        %1313 = vmatpush1.bf16.xpose.msra.mxu0 0
        %1314 = vmatprep.subr.bf16.mxu0 0
        %1315 = vmatpush1.bf16.xpose.msra.mxu0 0
        %1316 = vmatprep.subr.bf16.mxu0 0
        %1317 = vmatpush1.bf16.xpose.msra.mxu0 0
        %1318 = vmatprep.subr.bf16.mxu0 0
        %1319 = vmatpush1.bf16.xpose.msra.mxu0 0
        %1320 = vmatprep.subr.bf16.mxu0 0
        %1321 = vmatpush1.bf16.xpose.msra.mxu0 0
        %1322 = vmatprep.subr.bf16.mxu0 0
        %1323 = vmatpush1.bf16.xpose.msra.mxu0 0
        %1324 = vmatprep.subr.bf16.mxu0 0
        %1325 = vmatpush1.bf16.xpose.msra.mxu0 0
        %1326 = vmatprep.subr.bf16.mxu0 0
        %1327 = vmatpush1.bf16.xpose.msra.mxu0 0
        %1328 = vmatprep.subr.bf16.mxu0 0
        %1329 = vmatpush1.bf16.xpose.msra.mxu0 0
        %1330 = vmatprep.subr.bf16.mxu0 0
        %1331 = vmatpush1.bf16.xpose.msra.mxu0 0
        %1332 = vmatprep.subr.bf16.mxu0 0
        %1333 = vmatpush1.bf16.xpose.msra.mxu0 0
        %1334 = vmatprep.subr.bf16.mxu0 0
        %1335 = vmatpush1.bf16.xpose.msra.mxu0 0
        %1336 = vmatprep.subr.bf16.mxu0 0
        %1337 = vmatpush1.bf16.xpose.msra.mxu0 0
        %1338 = vmatprep.subr.bf16.mxu0 0
        %1339 = vmatpush1.bf16.xpose.msra.mxu0 0
        %1340 = vmatprep.subr.bf16.mxu0 0
        %1341 = vmatpush1.bf16.xpose.msra.mxu0 0
        %1342 = vmatprep.mubr.bf16.mxu0 0
        %1343 = vmatmul.mubr.bf16.gmra.mrb[0].mxu0 %v1305
        %v1344 = vpop.f32.mrb[0].mxu0
        %v1345 = vadd.f32 %v954, %v1344
        %v1346 = vpop.f32.mrb[0].mxu0
        %v1347 = vpop.f32.mrb[0].mxu0
        %v1348 = vpop.f32.mrb[0].mxu0
        %1349 = vdwg.mxu0
        %v1350 = vsel %vm959, %v1345, -inf
        %1351 = vmax.xlane.f32.xlu0 %v1350
        %v1352 = vpop.xlane.xlu0 %1351
        %v1353 = vsub.f32 %v1345, %v1352
        %v1354 = vmul.f32 %v1353, 1.442695
        %v1355 = vpow.pop %v1354
        %v1356 = vsel %vm959, %v1355, 0.0
        %1357 = vadd.xlane.f32.xlu0 %v1356
        %v1358 = vpop.xlane.xlu0 %1357
        %v1359 = vrcp.pop %v1358
        %v1360 = vmul.f32 %v1355, %v1359
        %v1361 = vpack.c.bf16 %v1360, %v1360
        %1362 = vrot.lane.b32.xlu0 %v955, 40
        %v1363 = vpop.permute.xlu0 %1362
        %v1365 = vsel %vm959, %v1361, 0
        %v1368 = vsel %vm1023, %v1363, 0
        %1370 = vmatprep.subr.bf16.mxu0 0
        %1371 = vmatpush1.bf16.msra.mxu0 %v1368
        %1372 = vmatprep.subr.bf16.mxu0 0
        %1373 = vmatpush1.bf16.msra.mxu0 0
        %1374 = vmatprep.subr.bf16.mxu0 0
        %1375 = vmatpush1.bf16.msra.mxu0 0
        %1376 = vmatprep.subr.bf16.mxu0 0
        %1377 = vmatpush1.bf16.msra.mxu0 0
        %1378 = vmatprep.subr.bf16.mxu0 0
        %1379 = vmatpush1.bf16.msra.mxu0 0
        %1380 = vmatprep.subr.bf16.mxu0 0
        %1381 = vmatpush1.bf16.msra.mxu0 0
        %1382 = vmatprep.subr.bf16.mxu0 0
        %1383 = vmatpush1.bf16.msra.mxu0 0
        %1384 = vmatprep.subr.bf16.mxu0 0
        %1385 = vmatpush1.bf16.msra.mxu0 0
        %1386 = vmatprep.subr.bf16.mxu0 0
        %1387 = vmatpush1.bf16.msra.mxu0 0
        %1388 = vmatprep.subr.bf16.mxu0 0
        %1389 = vmatpush1.bf16.msra.mxu0 0
        %1390 = vmatprep.subr.bf16.mxu0 0
        %1391 = vmatpush1.bf16.msra.mxu0 0
        %1392 = vmatprep.subr.bf16.mxu0 0
        %1393 = vmatpush1.bf16.msra.mxu0 0
        %1394 = vmatprep.subr.bf16.mxu0 0
        %1395 = vmatpush1.bf16.msra.mxu0 0
        %1396 = vmatprep.subr.bf16.mxu0 0
        %1397 = vmatpush1.bf16.msra.mxu0 0
        %1398 = vmatprep.subr.bf16.mxu0 0
        %1399 = vmatpush1.bf16.msra.mxu0 0
        %1400 = vmatprep.subr.bf16.mxu0 0
        %1401 = vmatpush1.bf16.msra.mxu0 0
        %1402 = vmatprep.mubr.bf16.mxu0 0
        %1403 = vmatmul.mubr.bf16.gmra.mrb[0].mxu0 %v1365
        %v1404 = vpop.f32.mrb[0].mxu0
        %v1405 = vadd.f32 0.0, %v1404
        %v1406 = vpop.f32.mrb[0].mxu0
        %v1407 = vpop.f32.mrb[0].mxu0
        %v1408 = vpop.f32.mrb[0].mxu0
        %1409 = vdwg.mxu0
        %1411 = vrot.lane.b32.xlu0 %v1405, 24
        %v1412 = vpop.permute.xlu0 %1411
        %vm1414 = vcmask 261312
        %1415 = vst.msk [vmem:[#allocation3] sm:$0xff] %vm1414, %v1412
        %v1416 = vld [vmem:[#allocation3] sm:$0xff]
        %v1417 = vpack.c.bf16 %v1416, %v1416
        %v1418 = vld [vmem:[%s807] sm:$0xf]
        %v1419 = vld [vmem:[%s807 + $0x4] sm:$0xf]
        %v1420 = vld [vmem:[%s807 + $0x8] sm:$0xf]
        %v1421 = vld [vmem:[%s807 + $0xc] sm:$0xf]
        %v1422 = vld [vmem:[%s810] sm:$0x1]
        %v1424 = vlaneseq
        %v1425 = vshrl.u32 %v1424, 7
        %v1426 = vsub.s32 0, %v1425
        %v1427 = vrot.slane %v1422, %v1426
        %v1433 = vunpack.c.l.b16 %v1418
        %v1434 = vunpack.c.l.b16 %v1419
        %v1435 = vunpack.c.l.b16 %v1420
        %v1436 = vunpack.c.l.b16 %v1421
        %v1437 = vpack.c.b16 %v1434, %v1433
        %v1438 = vpack.c.b16 %v1436, %v1435
        %v1442 = vsel %vm853, %v1417, 0
        %1444 = vmatprep.subr.bf16.mxu0 0
        %1445 = vmatpush1.bf16.msra.mxu0 %v1437
        %1446 = vmatprep.subr.bf16.mxu0 0
        %1447 = vmatpush1.bf16.msra.mxu0 %v1438
        %1448 = vmatprep.subr.bf16.mxu0 0
        %1449 = vmatpush1.bf16.msra.mxu0 0
        %1450 = vmatprep.subr.bf16.mxu0 0
        %1451 = vmatpush1.bf16.msra.mxu0 0
        %1452 = vmatprep.subr.bf16.mxu0 0
        %1453 = vmatpush1.bf16.msra.mxu0 0
        %1454 = vmatprep.subr.bf16.mxu0 0
        %1455 = vmatpush1.bf16.msra.mxu0 0
        %1456 = vmatprep.subr.bf16.mxu0 0
        %1457 = vmatpush1.bf16.msra.mxu0 0
        %1458 = vmatprep.subr.bf16.mxu0 0
        %1459 = vmatpush1.bf16.msra.mxu0 0
        %1460 = vmatprep.subr.bf16.mxu0 0
        %1461 = vmatpush1.bf16.msra.mxu0 0
        %1462 = vmatprep.subr.bf16.mxu0 0
        %1463 = vmatpush1.bf16.msra.mxu0 0
        %1464 = vmatprep.subr.bf16.mxu0 0
        %1465 = vmatpush1.bf16.msra.mxu0 0
        %1466 = vmatprep.subr.bf16.mxu0 0
        %1467 = vmatpush1.bf16.msra.mxu0 0
        %1468 = vmatprep.subr.bf16.mxu0 0
        %1469 = vmatpush1.bf16.msra.mxu0 0
        %1470 = vmatprep.subr.bf16.mxu0 0
        %1471 = vmatpush1.bf16.msra.mxu0 0
        %1472 = vmatprep.subr.bf16.mxu0 0
        %1473 = vmatpush1.bf16.msra.mxu0 0
        %1474 = vmatprep.subr.bf16.mxu0 0
        %1475 = vmatpush1.bf16.msra.mxu0 0
        %1476 = vmatprep.mubr.bf16.mxu0 0
        %1477 = vmatmul.mubr.bf16.gmra.mrb[0].mxu0 %v1442
        %v1478 = vpop.f32.mrb[0].mxu0
        %v1479 = vadd.f32 %v1427, %v1478
        %v1480 = vpop.f32.mrb[0].mxu0
        %v1481 = vpop.f32.mrb[0].mxu0
        %v1482 = vpop.f32.mrb[0].mxu0
        %1483 = vdwg.mxu0
        %v1484 = vadd.f32 %v850, %v1479
        %v1485 = vld [vmem:[%s813] sm:$0x1]
        %v1486 = vld [vmem:[%s816] sm:$0x1]
        %v1487 = vsel %vm853, %v1484, 0.0
        %1488 = vadd.xlane.f32.xlu0 %v1487
        %v1489 = vpop.xlane.xlu0 %1488
        %v1490 = vmul.f32 %v1489, %v857
        %v1491 = vsub.f32 %v1484, %v1490
        %v1492 = vmul.f32 %v1491, %v1491
        %v1493 = vsel %vm853, %v1492, 0.0
        %1494 = vadd.xlane.f32.xlu0 %v1493
        %v1495 = vpop.xlane.xlu0 %1494
        %v1496 = vmul.f32 %v1495, %v857
        %v1497 = vadd.f32 %v1496, 1e-05
        %v1498 = vrsqrt.pop %v1497
        %v1499 = vmul.f32 %v1491, %v1498
        %v1501 = vlaneseq
        %v1502 = vshrl.u32 %v1501, 7
        %v1503 = vsub.s32 0, %v1502
        %v1504 = vrot.slane %v1485, %v1503
        %v1506 = vmul.f32 %v1499, %v1504
        %v1508 = vlaneseq
        %v1509 = vshrl.u32 %v1508, 7
        %v1510 = vsub.s32 0, %v1509
        %v1511 = vrot.slane %v1486, %v1510
        %v1513 = vadd.f32 %v1506, %v1511
        %v1514 = vpack.c.bf16 %v1513, %v1513
        %v1515 = vld [vmem:[%s821] sm:$0xf]
        %v1516 = vld [vmem:[%s821 + $0x4] sm:$0xf]
        %v1517 = vld [vmem:[%s821 + $0x8] sm:$0xf]
        %v1518 = vld [vmem:[%s821 + $0xc] sm:$0xf]
        %v1519 = vld [vmem:[%s824] sm:$0x1]
        %v1521 = vlaneseq
        %v1522 = vshrl.u32 %v1521, 7
        %v1523 = vsub.s32 0, %v1522
        %v1524 = vrot.slane %v1519, %v1523
        %v1530 = vunpack.c.l.b16 %v1515
        %v1531 = vunpack.c.l.b16 %v1516
        %v1532 = vunpack.c.l.b16 %v1517
        %v1533 = vunpack.c.l.b16 %v1518
        %v1534 = vpack.c.b16 %v1531, %v1530
        %v1535 = vpack.c.b16 %v1533, %v1532
        %v1539 = vsel %vm853, %v1514, 0
        %1541 = vmatprep.subr.bf16.mxu0 0
        %1542 = vmatpush1.bf16.msra.mxu0 %v1534
        %1543 = vmatprep.subr.bf16.mxu0 0
        %1544 = vmatpush1.bf16.msra.mxu0 %v1535
        %1545 = vmatprep.subr.bf16.mxu0 0
        %1546 = vmatpush1.bf16.msra.mxu0 0
        %1547 = vmatprep.subr.bf16.mxu0 0
        %1548 = vmatpush1.bf16.msra.mxu0 0
        %1549 = vmatprep.subr.bf16.mxu0 0
        %1550 = vmatpush1.bf16.msra.mxu0 0
        %1551 = vmatprep.subr.bf16.mxu0 0
        %1552 = vmatpush1.bf16.msra.mxu0 0
        %1553 = vmatprep.subr.bf16.mxu0 0
        %1554 = vmatpush1.bf16.msra.mxu0 0
        %1555 = vmatprep.subr.bf16.mxu0 0
        %1556 = vmatpush1.bf16.msra.mxu0 0
        %1557 = vmatprep.subr.bf16.mxu0 0
        %1558 = vmatpush1.bf16.msra.mxu0 0
        %1559 = vmatprep.subr.bf16.mxu0 0
        %1560 = vmatpush1.bf16.msra.mxu0 0
        %1561 = vmatprep.subr.bf16.mxu0 0
        %1562 = vmatpush1.bf16.msra.mxu0 0
        %1563 = vmatprep.subr.bf16.mxu0 0
        %1564 = vmatpush1.bf16.msra.mxu0 0
        %1565 = vmatprep.subr.bf16.mxu0 0
        %1566 = vmatpush1.bf16.msra.mxu0 0
        %1567 = vmatprep.subr.bf16.mxu0 0
        %1568 = vmatpush1.bf16.msra.mxu0 0
        %1569 = vmatprep.subr.bf16.mxu0 0
        %1570 = vmatpush1.bf16.msra.mxu0 0
        %1571 = vmatprep.subr.bf16.mxu0 0
        %1572 = vmatpush1.bf16.msra.mxu0 0
        %1573 = vmatprep.mubr.bf16.mxu0 0
        %1574 = vmatmul.mubr.bf16.gmra.mrb[0].mxu0 %v1539
        %v1575 = vpop.f32.mrb[0].mxu0
        %v1576 = vadd.f32 %v1524, %v1575
        %v1577 = vpop.f32.mrb[0].mxu0
        %v1578 = vpop.f32.mrb[0].mxu0
        %v1579 = vpop.f32.mrb[0].mxu0
        %1580 = vdwg.mxu0
        %v1581 = vmul.f32 %v1576, 1.702
        %v1582 = vxor.u32 %v1581, 2147483648
        %v1583 = vmul.f32 %v1582, 1.442695
        %v1584 = vpow.pop %v1583
        %v1585 = vadd.f32 %v1584, 1.0
        %v1586 = vrcp.pop %v1585
        %v1587 = vmul.f32 1.0, %v1586
        %v1588 = vmul.f32 %v1576, %v1587
        %v1589 = vpack.c.bf16 %v1588, %v1588
        %v1590 = vld [vmem:[%s829] sm:$0xf]
        %v1591 = vld [vmem:[%s829 + $0x4] sm:$0xf]
        %v1592 = vld [vmem:[%s829 + $0x8] sm:$0xf]
        %v1593 = vld [vmem:[%s829 + $0xc] sm:$0xf]
        %v1594 = vld [vmem:[%s829 + $0x10] sm:$0xf]
        %v1595 = vld [vmem:[%s829 + $0x14] sm:$0xf]
        %v1596 = vld [vmem:[%s829 + $0x18] sm:$0xf]
        %v1597 = vld [vmem:[%s829 + $0x1c] sm:$0xf]
        %v1598 = vld [vmem:[%s829 + $0x20] sm:$0xf]
        %v1599 = vld [vmem:[%s829 + $0x24] sm:$0xf]
        %v1600 = vld [vmem:[%s829 + $0x28] sm:$0xf]
        %v1601 = vld [vmem:[%s829 + $0x2c] sm:$0xf]
        %v1602 = vld [vmem:[%s829 + $0x30] sm:$0xf]
        %v1603 = vld [vmem:[%s829 + $0x34] sm:$0xf]
        %v1604 = vld [vmem:[%s829 + $0x38] sm:$0xf]
        %v1605 = vld [vmem:[%s829 + $0x3c] sm:$0xf]
        %v1606 = vld [vmem:[%s832] sm:$0x1]
        %v1608 = vlaneseq
        %v1609 = vshrl.u32 %v1608, 7
        %v1610 = vsub.s32 0, %v1609
        %v1611 = vrot.slane %v1606, %v1610
        %v1629 = vunpack.c.l.b16 %v1590
        %v1630 = vunpack.c.l.b16 %v1591
        %v1631 = vunpack.c.l.b16 %v1592
        %v1632 = vunpack.c.l.b16 %v1593
        %v1633 = vunpack.c.l.b16 %v1594
        %v1634 = vunpack.c.l.b16 %v1595
        %v1635 = vunpack.c.l.b16 %v1596
        %v1636 = vunpack.c.l.b16 %v1597
        %v1637 = vunpack.c.l.b16 %v1598
        %v1638 = vunpack.c.l.b16 %v1599
        %v1639 = vunpack.c.l.b16 %v1600
        %v1640 = vunpack.c.l.b16 %v1601
        %v1641 = vunpack.c.l.b16 %v1602
        %v1642 = vunpack.c.l.b16 %v1603
        %v1643 = vunpack.c.l.b16 %v1604
        %v1644 = vunpack.c.l.b16 %v1605
        %v1645 = vpack.c.b16 %v1630, %v1629
        %v1646 = vpack.c.b16 %v1632, %v1631
        %v1647 = vpack.c.b16 %v1634, %v1633
        %v1648 = vpack.c.b16 %v1636, %v1635
        %v1649 = vpack.c.b16 %v1638, %v1637
        %v1650 = vpack.c.b16 %v1640, %v1639
        %v1651 = vpack.c.b16 %v1642, %v1641
        %v1652 = vpack.c.b16 %v1644, %v1643
        %1661 = vmatprep.subr.bf16.mxu0 0
        %1662 = vmatpush1.bf16.msra.mxu0 %v1645
        %1663 = vmatprep.subr.bf16.mxu0 0
        %1664 = vmatpush1.bf16.msra.mxu0 %v1646
        %1665 = vmatprep.subr.bf16.mxu0 0
        %1666 = vmatpush1.bf16.msra.mxu0 %v1647
        %1667 = vmatprep.subr.bf16.mxu0 0
        %1668 = vmatpush1.bf16.msra.mxu0 %v1648
        %1669 = vmatprep.subr.bf16.mxu0 0
        %1670 = vmatpush1.bf16.msra.mxu0 %v1649
        %1671 = vmatprep.subr.bf16.mxu0 0
        %1672 = vmatpush1.bf16.msra.mxu0 %v1650
        %1673 = vmatprep.subr.bf16.mxu0 0
        %1674 = vmatpush1.bf16.msra.mxu0 %v1651
        %1675 = vmatprep.subr.bf16.mxu0 0
        %1676 = vmatpush1.bf16.msra.mxu0 %v1652
        %1677 = vmatprep.subr.bf16.mxu0 0
        %1678 = vmatpush1.bf16.msra.mxu0 0
        %1679 = vmatprep.subr.bf16.mxu0 0
        %1680 = vmatpush1.bf16.msra.mxu0 0
        %1681 = vmatprep.subr.bf16.mxu0 0
        %1682 = vmatpush1.bf16.msra.mxu0 0
        %1683 = vmatprep.subr.bf16.mxu0 0
        %1684 = vmatpush1.bf16.msra.mxu0 0
        %1685 = vmatprep.subr.bf16.mxu0 0
        %1686 = vmatpush1.bf16.msra.mxu0 0
        %1687 = vmatprep.subr.bf16.mxu0 0
        %1688 = vmatpush1.bf16.msra.mxu0 0
        %1689 = vmatprep.subr.bf16.mxu0 0
        %1690 = vmatpush1.bf16.msra.mxu0 0
        %1691 = vmatprep.subr.bf16.mxu0 0
        %1692 = vmatpush1.bf16.msra.mxu0 0
        %1693 = vmatprep.mubr.bf16.mxu0 0
        %1694 = vmatmul.mubr.bf16.gmra.mrb[0].mxu0 %v1589
        %v1695 = vpop.f32.mrb[0].mxu0
        %v1696 = vadd.f32 %v1611, %v1695
        %v1697 = vpop.f32.mrb[0].mxu0
        %v1698 = vpop.f32.mrb[0].mxu0
        %v1699 = vpop.f32.mrb[0].mxu0
        %1700 = vdwg.mxu0
        %v1701 = vadd.f32 %v1484, %v1696
        %1702 = vst.msk [vmem:[#allocation2] sm:$0xff] %vm853, %v1701
        %p1703 = scmp.eq.s32.totalorder %s37, 2
        // Predicated region
        $region101: #{text_encoder_forward.1} parent=91 // pred_check
          %p1704 = pneg %p1703
        $region102: #{text_encoder_forward.1} parent=91 // pred_check_branch
          %1706 = sbr.rel (%p1704) target = $region104
        $region103: #{text_encoder_forward.1} parent=91 // pred_region
          %v1707 = vld [vmem:[%s788] sm:$0x1]
          %v1708 = vld [vmem:[#allocation2] sm:$0xff]
          %v1710 = vsel %vm959, %v1707, 0
          %1712 = vmatprep.subr.mxu0 0.0
          %1713 = vmatpush1.msra.mxu0 %v1708
          %1714 = vmatprep.subr.mxu0 0.0
          %1715 = vmatpush1.msra.mxu0 0.0
          %1716 = vmatprep.subr.mxu0 0.0
          %1717 = vmatpush1.msra.mxu0 0.0
          %1718 = vmatprep.subr.mxu0 0.0
          %1719 = vmatpush1.msra.mxu0 0.0
          %1720 = vmatprep.subr.mxu0 0.0
          %1721 = vmatpush1.msra.mxu0 0.0
          %1722 = vmatprep.subr.mxu0 0.0
          %1723 = vmatpush1.msra.mxu0 0.0
          %1724 = vmatprep.subr.mxu0 0.0
          %1725 = vmatpush1.msra.mxu0 0.0
          %1726 = vmatprep.subr.mxu0 0.0
          %1727 = vmatpush1.msra.mxu0 0.0
          %1728 = vmatprep.subr.mxu0 0.0
          %1729 = vmatpush1.msra.mxu0 0.0
          %1730 = vmatprep.subr.mxu0 0.0
          %1731 = vmatpush1.msra.mxu0 0.0
          %1732 = vmatprep.subr.mxu0 0.0
          %1733 = vmatpush1.msra.mxu0 0.0
          %1734 = vmatprep.subr.mxu0 0.0
          %1735 = vmatpush1.msra.mxu0 0.0
          %1736 = vmatprep.subr.mxu0 0.0
          %1737 = vmatpush1.msra.mxu0 0.0
          %1738 = vmatprep.subr.mxu0 0.0
          %1739 = vmatpush1.msra.mxu0 0.0
          %1740 = vmatprep.subr.mxu0 0.0
          %1741 = vmatpush1.msra.mxu0 0.0
          %1742 = vmatprep.subr.mxu0 0.0
          %1743 = vmatpush1.msra.mxu0 0.0
          %1744 = vmatprep.subr.mxu0 0.0
          %1745 = vmatpush1.msra.mxu0 0.0
          %1746 = vmatprep.subr.mxu0 0.0
          %1747 = vmatpush1.msra.mxu0 0.0
          %1748 = vmatprep.subr.mxu0 0.0
          %1749 = vmatpush1.msra.mxu0 0.0
          %1750 = vmatprep.subr.mxu0 0.0
          %1751 = vmatpush1.msra.mxu0 0.0
          %1752 = vmatprep.subr.mxu0 0.0
          %1753 = vmatpush1.msra.mxu0 0.0
          %1754 = vmatprep.subr.mxu0 0.0
          %1755 = vmatpush1.msra.mxu0 0.0
          %1756 = vmatprep.subr.mxu0 0.0
          %1757 = vmatpush1.msra.mxu0 0.0
          %1758 = vmatprep.subr.mxu0 0.0
          %1759 = vmatpush1.msra.mxu0 0.0
          %1760 = vmatprep.subr.mxu0 0.0
          %1761 = vmatpush1.msra.mxu0 0.0
          %1762 = vmatprep.subr.mxu0 0.0
          %1763 = vmatpush1.msra.mxu0 0.0
          %1764 = vmatprep.subr.mxu0 0.0
          %1765 = vmatpush1.msra.mxu0 0.0
          %1766 = vmatprep.subr.mxu0 0.0
          %1767 = vmatpush1.msra.mxu0 0.0
          %1768 = vmatprep.subr.mxu0 0.0
          %1769 = vmatpush1.msra.mxu0 0.0
          %1770 = vmatprep.subr.mxu0 0.0
          %1771 = vmatpush1.msra.mxu0 0.0
          %1772 = vmatprep.subr.mxu0 0.0
          %1773 = vmatpush1.msra.mxu0 0.0
          %1774 = vmatprep.subr.mxu0 0.0
          %1775 = vmatpush1.msra.mxu0 0.0
          %1776 = vmatprep.mubr.f32.mxu0 0.0
          %1777 = vmatmul.mubr.f32.gmra.mrb[0].mxu0 %v1710
          %v1778 = vpop.f32.mrb[0].mxu0
          %v1779 = vadd.f32 0.0, %v1778
          %v1780 = vpop.f32.mrb[0].mxu0
          %1781 = vdwg.mxu0
          %v1782 = vld [vmem:[%s15] sm:$0x1]
          %v1783 = vld [vmem:[%s16] sm:$0x1]
          %vm1784 = vcmask 253952
          %v1785 = vsel %vm1784, %v1779, 0.0
          %1786 = vadd.xlane.f32.xlu0 %v1785
          %v1787 = vpop.xlane.xlu0 %1786
          %v1788 = vmul.f32 %v1787, %v857
          %v1789 = vsub.f32 %v1779, %v1788
          %v1790 = vmul.f32 %v1789, %v1789
          %v1791 = vsel %vm1784, %v1790, 0.0
          %1792 = vadd.xlane.f32.xlu0 %v1791
          %v1793 = vpop.xlane.xlu0 %1792
          %v1794 = vmul.f32 %v1793, %v857
          %v1795 = vadd.f32 %v1794, 1e-05
          %v1796 = vrsqrt.pop %v1795
          %v1797 = vmul.f32 %v1789, %v1796
          %v1798 = vmul.f32 %v1797, %v1782
          %v1799 = vadd.f32 %v1798, %v1783
          %v1800 = vpack.c.bf16 %v1799, %v1799
          %v1801 = vld [vmem:[%s17] sm:$0xf]
          %v1802 = vld [vmem:[%s17 + $0x4] sm:$0xf]
          %v1803 = vld [vmem:[%s17 + $0x8] sm:$0xf]
          %v1804 = vld [vmem:[%s17 + $0xc] sm:$0xf]
          %v1809 = vunpack.c.l.b16 %v1801
          %v1810 = vunpack.c.l.b16 %v1802
          %v1811 = vunpack.c.l.b16 %v1803
          %v1812 = vunpack.c.l.b16 %v1804
          %v1813 = vpack.c.b16 %v1810, %v1809
          %v1814 = vpack.c.b16 %v1812, %v1811
          %v1818 = vsel %vm853, %v1800, 0
          %1820 = vmatprep.subr.bf16.mxu0 0
          %1821 = vmatpush1.bf16.msra.mxu0 %v1813
          %1822 = vmatprep.subr.bf16.mxu0 0
          %1823 = vmatpush1.bf16.msra.mxu0 %v1814
          %1824 = vmatprep.subr.bf16.mxu0 0
          %1825 = vmatpush1.bf16.msra.mxu0 0
          %1826 = vmatprep.subr.bf16.mxu0 0
          %1827 = vmatpush1.bf16.msra.mxu0 0
          %1828 = vmatprep.subr.bf16.mxu0 0
          %1829 = vmatpush1.bf16.msra.mxu0 0
          %1830 = vmatprep.subr.bf16.mxu0 0
          %1831 = vmatpush1.bf16.msra.mxu0 0
          %1832 = vmatprep.subr.bf16.mxu0 0
          %1833 = vmatpush1.bf16.msra.mxu0 0
          %1834 = vmatprep.subr.bf16.mxu0 0
          %1835 = vmatpush1.bf16.msra.mxu0 0
          %1836 = vmatprep.subr.bf16.mxu0 0
          %1837 = vmatpush1.bf16.msra.mxu0 0
          %1838 = vmatprep.subr.bf16.mxu0 0
          %1839 = vmatpush1.bf16.msra.mxu0 0
          %1840 = vmatprep.subr.bf16.mxu0 0
          %1841 = vmatpush1.bf16.msra.mxu0 0
          %1842 = vmatprep.subr.bf16.mxu0 0
          %1843 = vmatpush1.bf16.msra.mxu0 0
          %1844 = vmatprep.subr.bf16.mxu0 0
          %1845 = vmatpush1.bf16.msra.mxu0 0
          %1846 = vmatprep.subr.bf16.mxu0 0
          %1847 = vmatpush1.bf16.msra.mxu0 0
          %1848 = vmatprep.subr.bf16.mxu0 0
          %1849 = vmatpush1.bf16.msra.mxu0 0
          %1850 = vmatprep.subr.bf16.mxu0 0
          %1851 = vmatpush1.bf16.msra.mxu0 0
          %1852 = vmatprep.mubr.bf16.mxu0 0
          %1853 = vmatmul.mubr.bf16.gmra.mrb[0].mxu0 %v1818
          %v1854 = vpop.f32.mrb[0].mxu0
          %v1855 = vadd.f32 0.0, %v1854
          %v1856 = vpop.f32.mrb[0].mxu0
          %v1857 = vpop.f32.mrb[0].mxu0
          %v1858 = vpop.f32.mrb[0].mxu0
          %1859 = vdwg.mxu0
          %1860 = vst [vmem:[%s769] sm:$0x1] %v1855
        $region104: #{text_encoder_forward.1} parent=91 // pred_fallthru
          _
        %s1861 = sand.u32 %s513, 1
        %s1862 = scalar_lea.sflag [#allocation5], %s1861
        %s1863 = sand.u32 %s513, 1
        %s1864 = scalar_lea.vmem [#allocation4], %s1863
        // Predicated region
        $region105: #{text_encoder_forward.1} parent=91 // pred_check
          %p1865 = pneg %p523
        $region106: #{text_encoder_forward.1} parent=91 // pred_check_branch
          %1867 = sbr.rel (%p1865) target = $region108
        $region107: #{text_encoder_forward.1} parent=91 // pred_region
          %s1869 = ssub.s32 16, 16
          %1870 = vsyncadd %s1862, %s1869
          %s1871 = smul.addr %s36, 16
          %s1872 = scalar_lea.hbm %s18, %s1871
          %s1874 = sshll.u32 %s1864, 4
          %s1875 = int_to_ptr.vmem [resolvable:$true] %s1874
          %1877 = dma.vmem_to_hbm [thread:$0]  %s1875, 16, %s1872, %s1862
        $region108: #{text_encoder_forward.1} parent=91 // pred_fallthru
          _
      $region92: #{text_encoder_forward.1} parent=5 // pred_fallthru
        _
      %p1878 = scmp.le.s32.totalorder 2, %s27
      // Predicated region
      $region109: #{text_encoder_forward.1} parent=5 // pred_check
        %p1879 = pneg %p1878
      $region110: #{text_encoder_forward.1} parent=5 // pred_check_branch
        %1881 = sbr.rel (%p1879) target = $region112
      $region111: #{text_encoder_forward.1} parent=5 // pred_region
        %s1882 = ssub.s32 %s27, 2
        // Predicated region
        $region113: #{text_encoder_forward.1} parent=111 // pred_check
          %p1883 = pneg %p529
        $region114: #{text_encoder_forward.1} parent=111 // pred_check_branch
          %1885 = sbr.rel (%p1883) target = $region116
        $region115: #{text_encoder_forward.1} parent=111 // pred_region
          %s1886 = sand.u32 %s514, 1
          %s1887 = scalar_lea.sflag [#allocation5], %s1886
          %s1888 = sand.u32 %s514, 1
          %s1889 = scalar_lea.vmem [#allocation4], %s1888
          %1890 = dma.done %s1887, 16
        $region116: #{text_encoder_forward.1} parent=111 // pred_fallthru
          _
      $region112: #{text_encoder_forward.1} parent=5 // pred_fallthru
        _
    $region6: #{text_encoder_forward.1} parent=1 // loop_footer
      %s31 = sadd.s32 1, %s27
    $region7: #{text_encoder_forward.1} parent=1 // loop_footer_branch
      %26 = sbr.rel target = $region3
    $region8: #{text_encoder_forward.1} parent=1 // loop_exit
      _
    %1891 = vsyncpa [#allocation5], 1
    %s1892 = scalar_lea.sflag [#allocation5], 1
    %1893 = vsyncpa %s1892, 1

</llo_original>
